<compile_context>
chip_gen: v6e
topology: v6e:2x2x1
jax: 0.10.0
libtpu: 0.0.40
codegen_flags: <defaults>
</compile_context>

<pallas_src>
import functools
import math

import jax
import jax.numpy as jnp
from jax import lax
from jax.experimental import pallas as pl
from jax.experimental.pallas import tpu as pltpu

# ----- small synthetic config (stands in for bert-base-multilingual-uncased) -----
VOCAB = 100
MAX_POS = 64
TYPE_VOCAB = 2
HIDDEN = 32
NUM_HEADS = 2
HEAD_DIM = HIDDEN // NUM_HEADS
INTERMEDIATE = 64
NUM_LAYERS = 2
NUM_LABELS = 8
LN_EPS = 1e-12
CLS_PAD = 128          # classifier output padded to a lane-dense 128 columns
NEG_INF = -1e9


# ---------------------------- in-kernel helpers ----------------------------

def _layernorm(x, gamma, beta):
    mu = jnp.mean(x, axis=-1, keepdims=True)
    var = jnp.mean((x - mu) ** 2, axis=-1, keepdims=True)
    return (x - mu) * jax.lax.rsqrt(var + LN_EPS) * gamma + beta


def _gelu(x):
    # TODO(synk): HuggingFace BERT uses the exact erf GELU; tanh approximation kept here.
    return 0.5 * x * (1.0 + jnp.tanh(0.7978845608028654 * (x + 0.044715 * x * x * x)))


# --------------- fused encoder: all layers in ONE pallas_call ---------------

def _encoder_kernel(emb_ref, eg_ref, eb_ref, mask_ref,
                    wqkv_ref, bqkv_ref, wo_ref, bo_ref,
                    ln1g_ref, ln1b_ref, w1_ref, b1_ref,
                    w2_ref, b2_ref, ln2g_ref, ln2b_ref,
                    o_ref, *, seq, hidden, num_heads):
    head_dim = hidden // num_heads
    scale = 1.0 / math.sqrt(head_dim)

    # Layer 0: embedding LayerNorm written straight into the resident output block,
    # which then serves as the layer-to-layer activation carry (no extra VMEM copy).
    @pl.when(pl.program_id(1) == 0)
    def _():
        e = _layernorm(emb_ref[...].astype(jnp.float32), eg_ref[...], eb_ref[...])
        o_ref[...] = e.astype(jnp.bfloat16)

    x_bf = o_ref[...]                           # (S, H) bf16 — MXU operand
    x = x_bf.astype(jnp.float32)                # f32 for LN / residual math

    # Fused QKV projection: bf16 x bf16 with f32 accumulation on the MXU.
    qkv = (jnp.dot(x_bf, wqkv_ref[0], preferred_element_type=jnp.float32)
           + bqkv_ref[0]).astype(jnp.bfloat16)  # (S, 3H)

    # Layer-invariant additive mask (precomputed in the wrapper, streamed as bf16).
    add_mask = mask_ref[0].astype(jnp.float32)  # (S, S)

    # Multi-head attention. Batch is a grid axis, so only this example's S x S score
    # matrix is ever live; head contexts are folded into the output projection as
    # per-head MXU accumulation (no concatenations, no K transpose).
    attn = jnp.zeros((seq, hidden), jnp.float32)
    for h in range(num_heads):
        c = h * head_dim
        q = qkv[:, c:c + head_dim]
        k = qkv[:, hidden + c:hidden + c + head_dim]
        v = qkv[:, 2 * hidden + c:2 * hidden + c + head_dim]
        s = lax.dot_general(q, k, (((1,), (1,)), ((), ())),
                            preferred_element_type=jnp.float32) * scale + add_mask
        s = s - jnp.max(s, axis=-1, keepdims=True)
        p = jnp.exp(s)
        p = p * pl.reciprocal(jnp.sum(p, axis=-1, keepdims=True), approx=True)
        ctx = jnp.dot(p.astype(jnp.bfloat16), v, preferred_element_type=jnp.float32)
        attn = attn + jnp.dot(ctx.astype(jnp.bfloat16), wo_ref[0, c:c + head_dim, :],
                              preferred_element_type=jnp.float32)
    attn = attn + bo_ref[0]

    # Attention residual + LayerNorm (f32).
    x = _layernorm(x + attn, ln1g_ref[0], ln1b_ref[0])

    # FFN: w1 + GELU + w2 + residual + LayerNorm (fused, bf16 matmul operands).
    h1 = _gelu(jnp.dot(x.astype(jnp.bfloat16), w1_ref[0],
                       preferred_element_type=jnp.float32) + b1_ref[0])
    ffn = jnp.dot(h1.astype(jnp.bfloat16), w2_ref[0],
                  preferred_element_type=jnp.float32) + b2_ref[0]
    x_new = _layernorm(x + ffn, ln2g_ref[0], ln2b_ref[0])

    o_ref[...] = x_new.astype(jnp.bfloat16)     # carry to next layer / final output


def encoder_forward(params, emb_flat, add_mask, batch, seq):
    H, I, L = HIDDEN, INTERMEDIATE, NUM_LAYERS

    const2 = lambda r, c: pl.BlockSpec((r, c), lambda b, l: (0, 0))
    layer3 = lambda r, c: pl.BlockSpec((1, r, c), lambda b, l: (l, 0, 0))

    in_specs = [
        pl.BlockSpec((seq, H), lambda b, l: (b, 0)),            # embeddings, per-batch row block
        const2(1, H), const2(1, H),                             # embedding LN gamma/beta
        pl.BlockSpec((1, seq, seq), lambda b, l: (b, 0, 0)),    # additive attention mask (bf16)
        layer3(H, 3 * H), layer3(1, 3 * H),                     # fused QKV
        layer3(H, H), layer3(1, H),                             # attention output proj
        layer3(1, H), layer3(1, H),                             # LN1
        layer3(H, I), layer3(1, I),                             # FFN up
        layer3(I, H), layer3(1, H),                             # FFN down
        layer3(1, H), layer3(1, H),                             # LN2
    ]

    kernel = functools.partial(_encoder_kernel, seq=seq, hidden=H, num_heads=NUM_HEADS)
    return pl.pallas_call(
        kernel,
        out_shape=jax.ShapeDtypeStruct((batch * seq, H), jnp.bfloat16),
        grid=(batch, L),
        in_specs=in_specs,
        out_specs=pl.BlockSpec((seq, H), lambda b, l: (b, 0)),  # resident carry per batch row
        compiler_params=pltpu.CompilerParams(
            dimension_semantics=("parallel", "arbitrary")),
    )(emb_flat, params["emb_ln_g"], params["emb_ln_b"], add_mask,
      params["wqkv"], params["bqkv"], params["wo"], params["bo"],
      params["ln1_g"], params["ln1_b"], params["w1"], params["b1"],
      params["w2"], params["b2"], params["ln2_g"], params["ln2_b"])


# ---------- fused span-marker feature extraction + classifier ----------

def _span_classifier_kernel(start_ref, num_ref, lhs_ref, wc_ref, bc_ref, o_ref, *,
                            num_pairs, seq_len, hidden):
    b = pl.program_id(0)
    start = start_ref[b]
    num = num_ref[b]
    lhs = lhs_ref[0]                                              # (S, H) bf16

    # Single stacked one-hot selection matrix (bf16, values are exact 0/1): rows
    # [0, M) pick start markers, rows [M, 2M) pick end markers; rows with pair index
    # >= num stay zero (matching torch.zeros(...) init of feature_vector).
    # TODO(synk): for long sequences replace with pl.ds row copies from lhs_ref.
    rows = 2 * num_pairs
    r = lax.broadcasted_iota(jnp.int32, (rows, seq_len), 0)
    c = lax.broadcasted_iota(jnp.int32, (rows, seq_len), 1)
    pair = jnp.where(r < num_pairs, r, r - num_pairs)
    base = jnp.where(r < num_pairs, start, start + num)
    sel = jnp.where((pair < num) & (c == base + pair), 1.0, 0.0).astype(jnp.bfloat16)

    feat = jnp.dot(sel, lhs, preferred_element_type=jnp.float32)  # (2M, H) f32
    left = feat[:num_pairs].astype(jnp.bfloat16)                  # start-marker states
    right = feat[num_pairs:].astype(jnp.bfloat16)                 # end-marker states

    # Fused classifier: logits = [left | right] @ Wc + bc, split-K to avoid a concat.
    wc = wc_ref[...]                                              # (2H, 128) bf16
    logits = (jnp.dot(left, wc[:hidden], preferred_element_type=jnp.float32)
              + jnp.dot(right, wc[hidden:], preferred_element_type=jnp.float32)
              + bc_ref[...])
    o_ref[0] = logits                                             # (M, 128) lane-dense store


def span_classifier(last_hidden_state, start_marker_indices, num_marker_pairs, wc, bc):
    B, S, H = last_hidden_state.shape
    M = S // 2
    grid_spec = pltpu.PrefetchScalarGridSpec(
        num_scalar_prefetch=2,
        grid=(B,),
        in_specs=[
            pl.BlockSpec((1, S, H), lambda b, st, nm: (b, 0, 0)),
            pl.BlockSpec((2 * H, CLS_PAD), lambda b, st, nm: (0, 0)),
            pl.BlockSpec((1, CLS_PAD), lambda b, st, nm: (0, 0)),
        ],
        out_specs=pl.BlockSpec((1, M, CLS_PAD), lambda b, st, nm: (b, 0, 0)),
    )
    return pl.pallas_call(
        functools.partial(_span_classifier_kernel, num_pairs=M, seq_len=S, hidden=H),
        out_shape=jax.ShapeDtypeStruct((B, M, CLS_PAD), jnp.float32),
        grid_spec=grid_spec,
        compiler_params=pltpu.CompilerParams(dimension_semantics=("parallel",)),
    )(start_marker_indices, num_marker_pairs, last_hidden_state, wc, bc)


# ---------------------------- parameters ----------------------------

def init_params(key):
    def dense(k, shape):
        return 0.02 * jax.random.normal(k, shape, dtype=jnp.float32)

    L, H, I = NUM_LAYERS, HIDDEN, INTERMEDIATE
    k = jax.random.split(key, 8)

    cls_w = dense(k[7], (2 * H, NUM_LABELS))
    cls_b = jnp.zeros((NUM_LABELS,), jnp.float32)
    # Lane-dense padded classifier weights built ONCE here (not per forward call).
    cls_w_pad = jnp.zeros((2 * H, CLS_PAD), jnp.float32).at[:, :NUM_LABELS].set(cls_w)
    cls_b_pad = jnp.zeros((1, CLS_PAD), jnp.float32).at[:, :NUM_LABELS].set(cls_b)

    bf = lambda a: a.astype(jnp.bfloat16)
    return {
        "word_emb": dense(k[0], (VOCAB, H)),
        "pos_emb": dense(k[1], (MAX_POS, H)),
        "type_emb": dense(k[2], (TYPE_VOCAB, H)),
        "emb_ln_g": jnp.ones((1, H), jnp.float32),
        "emb_ln_b": jnp.zeros((1, H), jnp.float32),
        # Per-layer weights stacked on a leading layer axis; matmul operands in bf16,
        # biases / LN parameters stay f32.
        "wqkv": bf(dense(k[3], (L, H, 3 * H))), "bqkv": jnp.zeros((L, 1, 3 * H), jnp.float32),
        "wo": bf(dense(k[4], (L, H, H))), "bo": jnp.zeros((L, 1, H), jnp.float32),
        "ln1_g": jnp.ones((L, 1, H), jnp.float32), "ln1_b": jnp.zeros((L, 1, H), jnp.float32),
        "w1": bf(dense(k[5], (L, H, I))), "b1": jnp.zeros((L, 1, I), jnp.float32),
        "w2": bf(dense(k[6], (L, I, H))), "b2": jnp.zeros((L, 1, H), jnp.float32),
        "ln2_g": jnp.ones((L, 1, H), jnp.float32), "ln2_b": jnp.zeros((L, 1, H), jnp.float32),
        "cls_w_pad": bf(cls_w_pad),
        "cls_b_pad": cls_b_pad,
    }


# ---------------------------- forward ----------------------------

def span_marker_forward(params, input_ids, attention_mask, position_ids,
                        start_marker_indices, num_marker_pairs):
    B, S = input_ids.shape
    H = HIDDEN

    # Embedding table gathers stay in plain JAX glue; everything else is in kernels.
    token_type_ids = jnp.zeros_like(input_ids)
    emb = (params["word_emb"][input_ids]
           + params["pos_emb"][position_ids]
           + params["type_emb"][token_type_ids]).reshape(B * S, H)

    # Layer-invariant additive attention mask, computed once (SpanMarker supplies a full
    # (B, S, S) marker-aware mask matrix); bf16 halves its VMEM residency in the kernel.
    add_mask = ((1.0 - attention_mask.astype(jnp.float32)) * NEG_INF).astype(jnp.bfloat16)

    last_hidden = encoder_forward(params, emb.astype(jnp.bfloat16), add_mask, B, S)
    last_hidden = last_hidden.reshape(B, S, H)

    logits = span_classifier(last_hidden,
                             start_marker_indices.astype(jnp.int32),
                             num_marker_pairs.astype(jnp.int32),
                             params["cls_w_pad"], params["cls_b_pad"])
    return logits[..., :NUM_LABELS]


# ---------------------------- main ----------------------------

if __name__ == "__main__":
    key = jax.random.PRNGKey(0)
    pkey, ikey = jax.random.split(key)
    params = init_params(pkey)

    B, S = 2, 16
    input_ids = jax.random.randint(ikey, (B, S), 0, VOCAB, dtype=jnp.int32)
    attention_mask = jnp.ones((B, S, S), jnp.float32)
    position_ids = jnp.broadcast_to(jnp.arange(S, dtype=jnp.int32), (B, S))
    start_marker_indices = jnp.array([4, 6], dtype=jnp.int32)
    num_marker_pairs = jnp.array([3, 2], dtype=jnp.int32)

    fwd = jax.jit(span_marker_forward)
    logits = fwd(params, input_ids, attention_mask, position_ids,
                 start_marker_indices, num_marker_pairs)
    jax.block_until_ready(logits)
    assert logits.shape == (B, S // 2, NUM_LABELS)
    assert logits.dtype == jnp.float32
    print("KERNEL_OK")
</pallas_src>

<mosaic_0001>
module attributes {stable_mosaic.version = 11 : i64} {
  func.func @_span_classifier_kernel(%arg0: i32, %arg1: memref<2xi32, #tpu.memory_space<smem>>, %arg2: memref<2xi32, #tpu.memory_space<smem>>, %arg3: memref<1x16x32xbf16, #tpu.memory_space<vmem>>, %arg4: memref<64x128xbf16, #tpu.memory_space<vmem>>, %arg5: memref<1x128xf32, #tpu.memory_space<vmem>>, %arg6: memref<1x8x128xf32, #tpu.memory_space<vmem>>) attributes {dimension_semantics = [#tpu.dimension_semantics<parallel>], iteration_bounds = array<i64: 2>, scalar_prefetch = 2 : i64, scratch_operands = 0 : i64, tpu.core_type = #tpu.core_type<tc>, window_params = [{transform_indices = @transform_0, window_bounds = array<i64: 1, 16, 32>}, {pipeline_mode = #tpu.pipeline_mode<synchronous>, transform_indices = @transform_1, window_bounds = array<i64: 64, 128>}, {pipeline_mode = #tpu.pipeline_mode<synchronous>, transform_indices = @transform_2, window_bounds = array<i64: 1, 128>}, {transform_indices = @transform_3, window_bounds = array<i64: 1, 8, 128>}]} {
    %0 = arith.index_cast %arg0 : i32 to index
    %1 = memref.load %arg1[%0] : memref<2xi32, #tpu.memory_space<smem>>
    %2 = arith.index_cast %arg0 : i32 to index
    %3 = memref.load %arg2[%2] : memref<2xi32, #tpu.memory_space<smem>>
    %c0 = arith.constant 0 : index
    %c0_0 = arith.constant 0 : index
    %c0_1 = arith.constant 0 : index
    %4 = vector.load %arg3[%c0, %c0_0, %c0_1] : memref<1x16x32xbf16, #tpu.memory_space<vmem>>, vector<1x16x32xbf16>
    %5 = vector.shape_cast %4 : vector<1x16x32xbf16> to vector<16x32xbf16>
    %6 = tpu.iota {dimensions = array<i32: 0>} : vector<16x16xi32>
    %7 = tpu.iota {dimensions = array<i32: 1>} : vector<16x16xi32>
    %c8_i32 = arith.constant 8 : i32
    %8 = vector.broadcast %c8_i32 : i32 to vector<16x16xi32>
    %9 = arith.cmpi slt, %6, %8 : vector<16x16xi32>
    %c8_i32_2 = arith.constant 8 : i32
    %10 = vector.broadcast %c8_i32_2 : i32 to vector<16x16xi32>
    %11 = arith.subi %6, %10 : vector<16x16xi32>
    %12 = arith.select %9, %6, %11 : vector<16x16xi1>, vector<16x16xi32>
    %c8_i32_3 = arith.constant 8 : i32
    %13 = vector.broadcast %c8_i32_3 : i32 to vector<16x16xi32>
    %14 = arith.cmpi slt, %6, %13 : vector<16x16xi32>
    %15 = arith.addi %1, %3 : i32
    %16 = vector.broadcast %1 : i32 to vector<16x16xi32>
    %17 = vector.broadcast %15 : i32 to vector<16x16xi32>
    %18 = arith.select %14, %16, %17 : vector<16x16xi1>, vector<16x16xi32>
    %19 = vector.broadcast %3 : i32 to vector<16x16xi32>
    %20 = arith.cmpi slt, %12, %19 : vector<16x16xi32>
    %21 = arith.addi %18, %12 : vector<16x16xi32>
    %22 = arith.cmpi eq, %7, %21 : vector<16x16xi32>
    %23 = arith.andi %20, %22 : vector<16x16xi1>
    %cst = arith.constant 1.000000e+00 : f32
    %cst_4 = arith.constant 0.000000e+00 : f32
    %24 = vector.broadcast %cst : f32 to vector<16x16xf32>
    %25 = vector.broadcast %cst_4 : f32 to vector<16x16xf32>
    %26 = arith.select %23, %24, %25 : vector<16x16xi1>, vector<16x16xf32>
    %27 = arith.truncf %26 : vector<16x16xf32> to vector<16x16xbf16>
    %cst_5 = arith.constant dense<0.000000e+00> : vector<16x32xf32>
    %28 = tpu.matmul %27, %5, %cst_5 {dimension_numbers = #tpu.dot_dimension_numbers<[1], [0], [0], [1], [0, 0, 1, 1], [], []>} : vector<16x16xbf16>, vector<16x32xbf16>, vector<16x32xf32> -> vector<16x32xf32>
    %29 = vector.extract_strided_slice %28 {offsets = [0, 0], sizes = [8, 32], strides = [1, 1]} : vector<16x32xf32> to vector<8x32xf32>
    %30 = arith.truncf %29 : vector<8x32xf32> to vector<8x32xbf16>
    %31 = vector.extract_strided_slice %28 {offsets = [8, 0], sizes = [8, 32], strides = [1, 1]} : vector<16x32xf32> to vector<8x32xf32>
    %32 = arith.truncf %31 : vector<8x32xf32> to vector<8x32xbf16>
    %c0_6 = arith.constant 0 : index
    %c0_7 = arith.constant 0 : index
    %33 = vector.load %arg4[%c0_6, %c0_7] : memref<64x128xbf16, #tpu.memory_space<vmem>>, vector<64x128xbf16>
    %34 = vector.extract_strided_slice %33 {offsets = [0, 0], sizes = [32, 128], strides = [1, 1]} : vector<64x128xbf16> to vector<32x128xbf16>
    %cst_8 = arith.constant dense<0.000000e+00> : vector<8x128xf32>
    %35 = tpu.matmul %30, %34, %cst_8 {dimension_numbers = #tpu.dot_dimension_numbers<[1], [0], [0], [1], [0, 0, 1, 1], [], []>} : vector<8x32xbf16>, vector<32x128xbf16>, vector<8x128xf32> -> vector<8x128xf32>
    %36 = vector.extract_strided_slice %33 {offsets = [32, 0], sizes = [32, 128], strides = [1, 1]} : vector<64x128xbf16> to vector<32x128xbf16>
    %cst_9 = arith.constant dense<0.000000e+00> : vector<8x128xf32>
    %37 = tpu.matmul %32, %36, %cst_9 {dimension_numbers = #tpu.dot_dimension_numbers<[1], [0], [0], [1], [0, 0, 1, 1], [], []>} : vector<8x32xbf16>, vector<32x128xbf16>, vector<8x128xf32> -> vector<8x128xf32>
    %38 = arith.addf %35, %37 : vector<8x128xf32>
    %c0_10 = arith.constant 0 : index
    %c0_11 = arith.constant 0 : index
    %39 = vector.load %arg5[%c0_10, %c0_11] : memref<1x128xf32, #tpu.memory_space<vmem>>, vector<1x128xf32>
    %40 = vector.broadcast %39 : vector<1x128xf32> to vector<8x128xf32>
    %41 = arith.addf %38, %40 : vector<8x128xf32>
    %c0_12 = arith.constant 0 : index
    %c0_13 = arith.constant 0 : index
    %c0_14 = arith.constant 0 : index
    %42 = vector.load %arg6[%c0_12, %c0_13, %c0_14] : memref<1x8x128xf32, #tpu.memory_space<vmem>>, vector<1x8x128xf32>
    %43 = vector.shape_cast %42 : vector<1x8x128xf32> to vector<8x128xf32>
    %44 = vector.shape_cast %41 : vector<8x128xf32> to vector<1x8x128xf32>
    tpu.vector_store %arg6[%c0_12, %c0_13, %c0_14], %44 {strides = array<i32>} : memref<1x8x128xf32, #tpu.memory_space<vmem>>, vector<1x8x128xf32>,
    return
  }
  func.func @transform_0(%arg0: i32, %arg1: memref<2xi32, #tpu.memory_space<smem>>, %arg2: memref<2xi32, #tpu.memory_space<smem>>) -> (i32, i32, i32) {
    %c0_i32 = arith.constant 0 : i32
    %c0_i32_0 = arith.constant 0 : i32
    %c0_i32_1 = arith.constant 0 : i32
    return %arg0, %c0_i32, %c0_i32_0 : i32, i32, i32
  }
  func.func @transform_1(%arg0: i32, %arg1: memref<2xi32, #tpu.memory_space<smem>>, %arg2: memref<2xi32, #tpu.memory_space<smem>>) -> (i32, i32) {
    %c0_i32 = arith.constant 0 : i32
    %c0_i32_0 = arith.constant 0 : i32
    %c0_i32_1 = arith.constant 0 : i32
    return %c0_i32, %c0_i32_0 : i32, i32
  }
  func.func @transform_2(%arg0: i32, %arg1: memref<2xi32, #tpu.memory_space<smem>>, %arg2: memref<2xi32, #tpu.memory_space<smem>>) -> (i32, i32) {
    %c0_i32 = arith.constant 0 : i32
    %c0_i32_0 = arith.constant 0 : i32
    %c0_i32_1 = arith.constant 0 : i32
    return %c0_i32, %c0_i32_0 : i32, i32
  }
  func.func @transform_3(%arg0: i32, %arg1: memref<2xi32, #tpu.memory_space<smem>>, %arg2: memref<2xi32, #tpu.memory_space<smem>>) -> (i32, i32, i32) {
    %c0_i32 = arith.constant 0 : i32
    %c0_i32_0 = arith.constant 0 : i32
    %c0_i32_1 = arith.constant 0 : i32
    return %arg0, %c0_i32, %c0_i32_0 : i32, i32, i32
  }
}

module attributes {stable_mosaic.version = 11 : i64} {
  func.func @_encoder_kernel(%arg0: i32, %arg1: i32, %arg2: memref<16x32xbf16, #tpu.memory_space<vmem>>, %arg3: memref<1x32xf32, #tpu.memory_space<vmem>>, %arg4: memref<1x32xf32, #tpu.memory_space<vmem>>, %arg5: memref<1x16x16xbf16, #tpu.memory_space<vmem>>, %arg6: memref<1x32x96xbf16, #tpu.memory_space<vmem>>, %arg7: memref<1x1x96xf32, #tpu.memory_space<vmem>>, %arg8: memref<1x32x32xbf16, #tpu.memory_space<vmem>>, %arg9: memref<1x1x32xf32, #tpu.memory_space<vmem>>, %arg10: memref<1x1x32xf32, #tpu.memory_space<vmem>>, %arg11: memref<1x1x32xf32, #tpu.memory_space<vmem>>, %arg12: memref<1x32x64xbf16, #tpu.memory_space<vmem>>, %arg13: memref<1x1x64xf32, #tpu.memory_space<vmem>>, %arg14: memref<1x64x32xbf16, #tpu.memory_space<vmem>>, %arg15: memref<1x1x32xf32, #tpu.memory_space<vmem>>, %arg16: memref<1x1x32xf32, #tpu.memory_space<vmem>>, %arg17: memref<1x1x32xf32, #tpu.memory_space<vmem>>, %arg18: memref<16x32xbf16, #tpu.memory_space<vmem>>) attributes {dimension_semantics = [#tpu.dimension_semantics<parallel>, #tpu.dimension_semantics<arbitrary>], iteration_bounds = array<i64: 2, 2>, scalar_prefetch = 0 : i64, scratch_operands = 0 : i64, tpu.core_type = #tpu.core_type<tc>, window_params = [{transform_indices = @transform_0, window_bounds = array<i64: 16, 32>}, {pipeline_mode = #tpu.pipeline_mode<synchronous>, transform_indices = @transform_1, window_bounds = array<i64: 1, 32>}, {pipeline_mode = #tpu.pipeline_mode<synchronous>, transform_indices = @transform_2, window_bounds = array<i64: 1, 32>}, {transform_indices = @transform_3, window_bounds = array<i64: 1, 16, 16>}, {transform_indices = @transform_4, window_bounds = array<i64: 1, 32, 96>}, {transform_indices = @transform_5, window_bounds = array<i64: 1, 1, 96>}, {transform_indices = @transform_6, window_bounds = array<i64: 1, 32, 32>}, {transform_indices = @transform_7, window_bounds = array<i64: 1, 1, 32>}, {transform_indices = @transform_8, window_bounds = array<i64: 1, 1, 32>}, {transform_indices = @transform_9, window_bounds = array<i64: 1, 1, 32>}, {transform_indices = @transform_10, window_bounds = array<i64: 1, 32, 64>}, {transform_indices = @transform_11, window_bounds = array<i64: 1, 1, 64>}, {transform_indices = @transform_12, window_bounds = array<i64: 1, 64, 32>}, {transform_indices = @transform_13, window_bounds = array<i64: 1, 1, 32>}, {transform_indices = @transform_14, window_bounds = array<i64: 1, 1, 32>}, {transform_indices = @transform_15, window_bounds = array<i64: 1, 1, 32>}, {transform_indices = @transform_16, window_bounds = array<i64: 16, 32>}]} {
    %c0_i32 = arith.constant 0 : i32
    %0 = arith.cmpi eq, %arg1, %c0_i32 : i32
    %1 = arith.extui %0 : i1 to i32
    %c0_i32_0 = arith.constant 0 : i32
    %2 = arith.cmpi ne, %1, %c0_i32_0 : i32
    scf.if %2 {
      %c0_74 = arith.constant 0 : index
      %c0_75 = arith.constant 0 : index
      %154 = vector.load %arg2[%c0_74, %c0_75] : memref<16x32xbf16, #tpu.memory_space<vmem>>, vector<16x32xbf16>
      %155 = arith.extf %154 : vector<16x32xbf16> to vector<16x32xf32>
      %c0_76 = arith.constant 0 : index
      %c0_77 = arith.constant 0 : index
      %156 = vector.load %arg3[%c0_76, %c0_77] : memref<1x32xf32, #tpu.memory_space<vmem>>, vector<1x32xf32>
      %c0_78 = arith.constant 0 : index
      %c0_79 = arith.constant 0 : index
      %157 = vector.load %arg4[%c0_78, %c0_79] : memref<1x32xf32, #tpu.memory_space<vmem>>, vector<1x32xf32>
      %cst_80 = arith.constant dense<0.000000e+00> : vector<16xf32>
      %158 = vector.multi_reduction <add>, %155, %cst_80 [1] : vector<16x32xf32> to vector<16xf32>
      %159 = vector.shape_cast %158 : vector<16xf32> to vector<16x1xf32>
      %cst_81 = arith.constant 3.200000e+01 : f32
      %160 = vector.broadcast %cst_81 : f32 to vector<16x1xf32>
      %161 = arith.divf %159, %160 : vector<16x1xf32>
      %162 = vector.broadcast %161 : vector<16x1xf32> to vector<16x32xf32>
      %163 = arith.subf %155, %162 : vector<16x32xf32>
      %164 = arith.mulf %163, %163 : vector<16x32xf32>
      %cst_82 = arith.constant dense<0.000000e+00> : vector<16xf32>
      %165 = vector.multi_reduction <add>, %164, %cst_82 [1] : vector<16x32xf32> to vector<16xf32>
      %166 = vector.shape_cast %165 : vector<16xf32> to vector<16x1xf32>
      %cst_83 = arith.constant 3.200000e+01 : f32
      %167 = vector.broadcast %cst_83 : f32 to vector<16x1xf32>
      %168 = arith.divf %166, %167 : vector<16x1xf32>
      %169 = vector.broadcast %161 : vector<16x1xf32> to vector<16x32xf32>
      %170 = arith.subf %155, %169 : vector<16x32xf32>
      %cst_84 = arith.constant 9.99999996E-13 : f32
      %171 = vector.broadcast %cst_84 : f32 to vector<16x1xf32>
      %172 = arith.addf %168, %171 : vector<16x1xf32>
      %173 = math.rsqrt %172 : vector<16x1xf32>
      %174 = vector.broadcast %173 : vector<16x1xf32> to vector<16x32xf32>
      %175 = arith.mulf %170, %174 : vector<16x32xf32>
      %176 = vector.broadcast %156 : vector<1x32xf32> to vector<16x32xf32>
      %177 = arith.mulf %175, %176 : vector<16x32xf32>
      %178 = vector.broadcast %157 : vector<1x32xf32> to vector<16x32xf32>
      %179 = arith.addf %177, %178 : vector<16x32xf32>
      %180 = arith.truncf %179 : vector<16x32xf32> to vector<16x32xbf16>
      %c0_85 = arith.constant 0 : index
      %c0_86 = arith.constant 0 : index
      %181 = vector.load %arg18[%c0_85, %c0_86] : memref<16x32xbf16, #tpu.memory_space<vmem>>, vector<16x32xbf16>
      tpu.vector_store %arg18[%c0_85, %c0_86], %180 {strides = array<i32>} : memref<16x32xbf16, #tpu.memory_space<vmem>>, vector<16x32xbf16>,
    } else {
    }
    %c0 = arith.constant 0 : index
    %c0_1 = arith.constant 0 : index
    %3 = vector.load %arg18[%c0, %c0_1] : memref<16x32xbf16, #tpu.memory_space<vmem>>, vector<16x32xbf16>
    %4 = arith.extf %3 : vector<16x32xbf16> to vector<16x32xf32>
    %c0_2 = arith.constant 0 : index
    %c0_3 = arith.constant 0 : index
    %c0_4 = arith.constant 0 : index
    %5 = vector.load %arg6[%c0_2, %c0_3, %c0_4] : memref<1x32x96xbf16, #tpu.memory_space<vmem>>, vector<1x32x96xbf16>
    %6 = vector.shape_cast %5 : vector<1x32x96xbf16> to vector<32x96xbf16>
    %cst = arith.constant dense<0.000000e+00> : vector<16x96xf32>
    %7 = tpu.matmul %3, %6, %cst {dimension_numbers = #tpu.dot_dimension_numbers<[1], [0], [0], [1], [0, 0, 1, 1], [], []>} : vector<16x32xbf16>, vector<32x96xbf16>, vector<16x96xf32> -> vector<16x96xf32>
    %c0_5 = arith.constant 0 : index
    %c0_6 = arith.constant 0 : index
    %c0_7 = arith.constant 0 : index
    %8 = vector.load %arg7[%c0_5, %c0_6, %c0_7] : memref<1x1x96xf32, #tpu.memory_space<vmem>>, vector<1x1x96xf32>
    %9 = vector.shape_cast %8 : vector<1x1x96xf32> to vector<1x96xf32>
    %10 = vector.broadcast %9 : vector<1x96xf32> to vector<16x96xf32>
    %11 = arith.addf %7, %10 : vector<16x96xf32>
    %12 = arith.truncf %11 : vector<16x96xf32> to vector<16x96xbf16>
    %c0_8 = arith.constant 0 : index
    %c0_9 = arith.constant 0 : index
    %c0_10 = arith.constant 0 : index
    %13 = vector.load %arg5[%c0_8, %c0_9, %c0_10] : memref<1x16x16xbf16, #tpu.memory_space<vmem>>, vector<1x16x16xbf16>
    %14 = vector.shape_cast %13 : vector<1x16x16xbf16> to vector<16x16xbf16>
    %15 = arith.extf %14 : vector<16x16xbf16> to vector<16x16xf32>
    %cst_11 = arith.constant 0.000000e+00 : f32
    %16 = vector.broadcast %cst_11 : f32 to vector<16x32xf32>
    %17 = vector.extract_strided_slice %12 {offsets = [0, 0], sizes = [16, 16], strides = [1, 1]} : vector<16x96xbf16> to vector<16x16xbf16>
    %18 = vector.extract_strided_slice %12 {offsets = [0, 32], sizes = [16, 16], strides = [1, 1]} : vector<16x96xbf16> to vector<16x16xbf16>
    %19 = vector.extract_strided_slice %12 {offsets = [0, 64], sizes = [16, 16], strides = [1, 1]} : vector<16x96xbf16> to vector<16x16xbf16>
    %cst_12 = arith.constant dense<0.000000e+00> : vector<16x16xf32>
    %20 = tpu.matmul %17, %18, %cst_12 {dimension_numbers = #tpu.dot_dimension_numbers<[1], [1], [0], [0], [0, 0, 1, 0], [], []>} : vector<16x16xbf16>, vector<16x16xbf16>, vector<16x16xf32> -> vector<16x16xf32>
    %cst_13 = arith.constant 2.500000e-01 : f32
    %21 = vector.broadcast %cst_13 : f32 to vector<16x16xf32>
    %22 = arith.mulf %20, %21 : vector<16x16xf32>
    %23 = arith.addf %22, %15 : vector<16x16xf32>
    %cst_14 = arith.constant dense<0xFF800000> : vector<16xf32>
    %24 = vector.multi_reduction <maximumf>, %23, %cst_14 [1] : vector<16x16xf32> to vector<16xf32>
    %25 = vector.shape_cast %24 : vector<16xf32> to vector<16x1xf32>
    %26 = vector.broadcast %25 : vector<16x1xf32> to vector<16x16xf32>
    %27 = arith.subf %23, %26 : vector<16x16xf32>
    %28 = math.exp %27 : vector<16x16xf32>
    %cst_15 = arith.constant dense<0.000000e+00> : vector<16xf32>
    %29 = vector.multi_reduction <add>, %28, %cst_15 [1] : vector<16x16xf32> to vector<16xf32>
    %30 = vector.shape_cast %29 : vector<16xf32> to vector<16x1xf32>
    %31 = tpu.reciprocal %30 {approx = true} : vector<16x1xf32> -> vector<16x1xf32>
    %32 = vector.broadcast %31 : vector<16x1xf32> to vector<16x16xf32>
    %33 = arith.mulf %28, %32 : vector<16x16xf32>
    %34 = arith.truncf %33 : vector<16x16xf32> to vector<16x16xbf16>
    %cst_16 = arith.constant dense<0.000000e+00> : vector<16x16xf32>
    %35 = tpu.matmul %34, %19, %cst_16 {dimension_numbers = #tpu.dot_dimension_numbers<[1], [0], [0], [1], [0, 0, 1, 1], [], []>} : vector<16x16xbf16>, vector<16x16xbf16>, vector<16x16xf32> -> vector<16x16xf32>
    %36 = arith.truncf %35 : vector<16x16xf32> to vector<16x16xbf16>
    %c0_17 = arith.constant 0 : index
    %c0_18 = arith.constant 0 : index
    %c0_19 = arith.constant 0 : index
    %37 = vector.load %arg8[%c0_17, %c0_18, %c0_19] : memref<1x32x32xbf16, #tpu.memory_space<vmem>>, vector<1x16x32xbf16>
    %38 = vector.shape_cast %37 : vector<1x16x32xbf16> to vector<16x32xbf16>
    %cst_20 = arith.constant dense<0.000000e+00> : vector<16x32xf32>
    %39 = tpu.matmul %36, %38, %cst_20 {dimension_numbers = #tpu.dot_dimension_numbers<[1], [0], [0], [1], [0, 0, 1, 1], [], []>} : vector<16x16xbf16>, vector<16x32xbf16>, vector<16x32xf32> -> vector<16x32xf32>
    %40 = arith.addf %16, %39 : vector<16x32xf32>
    %41 = vector.extract_strided_slice %12 {offsets = [0, 16], sizes = [16, 16], strides = [1, 1]} : vector<16x96xbf16> to vector<16x16xbf16>
    %42 = vector.extract_strided_slice %12 {offsets = [0, 48], sizes = [16, 16], strides = [1, 1]} : vector<16x96xbf16> to vector<16x16xbf16>
    %43 = vector.extract_strided_slice %12 {offsets = [0, 80], sizes = [16, 16], strides = [1, 1]} : vector<16x96xbf16> to vector<16x16xbf16>
    %cst_21 = arith.constant dense<0.000000e+00> : vector<16x16xf32>
    %44 = tpu.matmul %41, %42, %cst_21 {dimension_numbers = #tpu.dot_dimension_numbers<[1], [1], [0], [0], [0, 0, 1, 0], [], []>} : vector<16x16xbf16>, vector<16x16xbf16>, vector<16x16xf32> -> vector<16x16xf32>
    %cst_22 = arith.constant 2.500000e-01 : f32
    %45 = vector.broadcast %cst_22 : f32 to vector<16x16xf32>
    %46 = arith.mulf %44, %45 : vector<16x16xf32>
    %47 = arith.addf %46, %15 : vector<16x16xf32>
    %cst_23 = arith.constant dense<0xFF800000> : vector<16xf32>
    %48 = vector.multi_reduction <maximumf>, %47, %cst_23 [1] : vector<16x16xf32> to vector<16xf32>
    %49 = vector.shape_cast %48 : vector<16xf32> to vector<16x1xf32>
    %50 = vector.broadcast %49 : vector<16x1xf32> to vector<16x16xf32>
    %51 = arith.subf %47, %50 : vector<16x16xf32>
    %52 = math.exp %51 : vector<16x16xf32>
    %cst_24 = arith.constant dense<0.000000e+00> : vector<16xf32>
    %53 = vector.multi_reduction <add>, %52, %cst_24 [1] : vector<16x16xf32> to vector<16xf32>
    %54 = vector.shape_cast %53 : vector<16xf32> to vector<16x1xf32>
    %55 = tpu.reciprocal %54 {approx = true} : vector<16x1xf32> -> vector<16x1xf32>
    %56 = vector.broadcast %55 : vector<16x1xf32> to vector<16x16xf32>
    %57 = arith.mulf %52, %56 : vector<16x16xf32>
    %58 = arith.truncf %57 : vector<16x16xf32> to vector<16x16xbf16>
    %cst_25 = arith.constant dense<0.000000e+00> : vector<16x16xf32>
    %59 = tpu.matmul %58, %43, %cst_25 {dimension_numbers = #tpu.dot_dimension_numbers<[1], [0], [0], [1], [0, 0, 1, 1], [], []>} : vector<16x16xbf16>, vector<16x16xbf16>, vector<16x16xf32> -> vector<16x16xf32>
    %60 = arith.truncf %59 : vector<16x16xf32> to vector<16x16xbf16>
    %c0_26 = arith.constant 0 : index
    %c16 = arith.constant 16 : index
    %c0_27 = arith.constant 0 : index
    %61 = vector.load %arg8[%c0_26, %c16, %c0_27] : memref<1x32x32xbf16, #tpu.memory_space<vmem>>, vector<1x16x32xbf16>
    %62 = vector.shape_cast %61 : vector<1x16x32xbf16> to vector<16x32xbf16>
    %cst_28 = arith.constant dense<0.000000e+00> : vector<16x32xf32>
    %63 = tpu.matmul %60, %62, %cst_28 {dimension_numbers = #tpu.dot_dimension_numbers<[1], [0], [0], [1], [0, 0, 1, 1], [], []>} : vector<16x16xbf16>, vector<16x32xbf16>, vector<16x32xf32> -> vector<16x32xf32>
    %64 = arith.addf %40, %63 : vector<16x32xf32>
    %c0_29 = arith.constant 0 : index
    %c0_30 = arith.constant 0 : index
    %c0_31 = arith.constant 0 : index
    %65 = vector.load %arg9[%c0_29, %c0_30, %c0_31] : memref<1x1x32xf32, #tpu.memory_space<vmem>>, vector<1x1x32xf32>
    %66 = vector.shape_cast %65 : vector<1x1x32xf32> to vector<1x32xf32>
    %67 = vector.broadcast %66 : vector<1x32xf32> to vector<16x32xf32>
    %68 = arith.addf %64, %67 : vector<16x32xf32>
    %69 = arith.addf %4, %68 : vector<16x32xf32>
    %c0_32 = arith.constant 0 : index
    %c0_33 = arith.constant 0 : index
    %c0_34 = arith.constant 0 : index
    %70 = vector.load %arg10[%c0_32, %c0_33, %c0_34] : memref<1x1x32xf32, #tpu.memory_space<vmem>>, vector<1x1x32xf32>
    %71 = vector.shape_cast %70 : vector<1x1x32xf32> to vector<1x32xf32>
    %c0_35 = arith.constant 0 : index
    %c0_36 = arith.constant 0 : index
    %c0_37 = arith.constant 0 : index
    %72 = vector.load %arg11[%c0_35, %c0_36, %c0_37] : memref<1x1x32xf32, #tpu.memory_space<vmem>>, vector<1x1x32xf32>
    %73 = vector.shape_cast %72 : vector<1x1x32xf32> to vector<1x32xf32>
    %cst_38 = arith.constant dense<0.000000e+00> : vector<16xf32>
    %74 = vector.multi_reduction <add>, %69, %cst_38 [1] : vector<16x32xf32> to vector<16xf32>
    %75 = vector.shape_cast %74 : vector<16xf32> to vector<16x1xf32>
    %cst_39 = arith.constant 3.200000e+01 : f32
    %76 = vector.broadcast %cst_39 : f32 to vector<16x1xf32>
    %77 = arith.divf %75, %76 : vector<16x1xf32>
    %78 = vector.broadcast %77 : vector<16x1xf32> to vector<16x32xf32>
    %79 = arith.subf %69, %78 : vector<16x32xf32>
    %80 = arith.mulf %79, %79 : vector<16x32xf32>
    %cst_40 = arith.constant dense<0.000000e+00> : vector<16xf32>
    %81 = vector.multi_reduction <add>, %80, %cst_40 [1] : vector<16x32xf32> to vector<16xf32>
    %82 = vector.shape_cast %81 : vector<16xf32> to vector<16x1xf32>
    %cst_41 = arith.constant 3.200000e+01 : f32
    %83 = vector.broadcast %cst_41 : f32 to vector<16x1xf32>
    %84 = arith.divf %82, %83 : vector<16x1xf32>
    %85 = vector.broadcast %77 : vector<16x1xf32> to vector<16x32xf32>
    %86 = arith.subf %69, %85 : vector<16x32xf32>
    %cst_42 = arith.constant 9.99999996E-13 : f32
    %87 = vector.broadcast %cst_42 : f32 to vector<16x1xf32>
    %88 = arith.addf %84, %87 : vector<16x1xf32>
    %89 = math.rsqrt %88 : vector<16x1xf32>
    %90 = vector.broadcast %89 : vector<16x1xf32> to vector<16x32xf32>
    %91 = arith.mulf %86, %90 : vector<16x32xf32>
    %92 = vector.broadcast %71 : vector<1x32xf32> to vector<16x32xf32>
    %93 = arith.mulf %91, %92 : vector<16x32xf32>
    %94 = vector.broadcast %73 : vector<1x32xf32> to vector<16x32xf32>
    %95 = arith.addf %93, %94 : vector<16x32xf32>
    %96 = arith.truncf %95 : vector<16x32xf32> to vector<16x32xbf16>
    %c0_43 = arith.constant 0 : index
    %c0_44 = arith.constant 0 : index
    %c0_45 = arith.constant 0 : index
    %97 = vector.load %arg12[%c0_43, %c0_44, %c0_45] : memref<1x32x64xbf16, #tpu.memory_space<vmem>>, vector<1x32x64xbf16>
    %98 = vector.shape_cast %97 : vector<1x32x64xbf16> to vector<32x64xbf16>
    %cst_46 = arith.constant dense<0.000000e+00> : vector<16x64xf32>
    %99 = tpu.matmul %96, %98, %cst_46 {dimension_numbers = #tpu.dot_dimension_numbers<[1], [0], [0], [1], [0, 0, 1, 1], [], []>} : vector<16x32xbf16>, vector<32x64xbf16>, vector<16x64xf32> -> vector<16x64xf32>
    %c0_47 = arith.constant 0 : index
    %c0_48 = arith.constant 0 : index
    %c0_49 = arith.constant 0 : index
    %100 = vector.load %arg13[%c0_47, %c0_48, %c0_49] : memref<1x1x64xf32, #tpu.memory_space<vmem>>, vector<1x1x64xf32>
    %101 = vector.shape_cast %100 : vector<1x1x64xf32> to vector<1x64xf32>
    %102 = vector.broadcast %101 : vector<1x64xf32> to vector<16x64xf32>
    %103 = arith.addf %99, %102 : vector<16x64xf32>
    %cst_50 = arith.constant 5.000000e-01 : f32
    %104 = vector.broadcast %cst_50 : f32 to vector<16x64xf32>
    %105 = arith.mulf %104, %103 : vector<16x64xf32>
    %cst_51 = arith.constant 4.471500e-02 : f32
    %106 = vector.broadcast %cst_51 : f32 to vector<16x64xf32>
    %107 = arith.mulf %106, %103 : vector<16x64xf32>
    %108 = arith.mulf %107, %103 : vector<16x64xf32>
    %109 = arith.mulf %108, %103 : vector<16x64xf32>
    %110 = arith.addf %103, %109 : vector<16x64xf32>
    %cst_52 = arith.constant 0.797884583 : f32
    %111 = vector.broadcast %cst_52 : f32 to vector<16x64xf32>
    %112 = arith.mulf %111, %110 : vector<16x64xf32>
    %113 = math.tanh %112 : vector<16x64xf32>
    %cst_53 = arith.constant 1.000000e+00 : f32
    %114 = vector.broadcast %cst_53 : f32 to vector<16x64xf32>
    %115 = arith.addf %114, %113 : vector<16x64xf32>
    %116 = arith.mulf %105, %115 : vector<16x64xf32>
    %117 = arith.truncf %116 : vector<16x64xf32> to vector<16x64xbf16>
    %c0_54 = arith.constant 0 : index
    %c0_55 = arith.constant 0 : index
    %c0_56 = arith.constant 0 : index
    %118 = vector.load %arg14[%c0_54, %c0_55, %c0_56] : memref<1x64x32xbf16, #tpu.memory_space<vmem>>, vector<1x64x32xbf16>
    %119 = vector.shape_cast %118 : vector<1x64x32xbf16> to vector<64x32xbf16>
    %cst_57 = arith.constant dense<0.000000e+00> : vector<16x32xf32>
    %120 = tpu.matmul %117, %119, %cst_57 {dimension_numbers = #tpu.dot_dimension_numbers<[1], [0], [0], [1], [0, 0, 1, 1], [], []>} : vector<16x64xbf16>, vector<64x32xbf16>, vector<16x32xf32> -> vector<16x32xf32>
    %c0_58 = arith.constant 0 : index
    %c0_59 = arith.constant 0 : index
    %c0_60 = arith.constant 0 : index
    %121 = vector.load %arg15[%c0_58, %c0_59, %c0_60] : memref<1x1x32xf32, #tpu.memory_space<vmem>>, vector<1x1x32xf32>
    %122 = vector.shape_cast %121 : vector<1x1x32xf32> to vector<1x32xf32>
    %123 = vector.broadcast %122 : vector<1x32xf32> to vector<16x32xf32>
    %124 = arith.addf %120, %123 : vector<16x32xf32>
    %125 = arith.addf %95, %124 : vector<16x32xf32>
    %c0_61 = arith.constant 0 : index
    %c0_62 = arith.constant 0 : index
    %c0_63 = arith.constant 0 : index
    %126 = vector.load %arg16[%c0_61, %c0_62, %c0_63] : memref<1x1x32xf32, #tpu.memory_space<vmem>>, vector<1x1x32xf32>
    %127 = vector.shape_cast %126 : vector<1x1x32xf32> to vector<1x32xf32>
    %c0_64 = arith.constant 0 : index
    %c0_65 = arith.constant 0 : index
    %c0_66 = arith.constant 0 : index
    %128 = vector.load %arg17[%c0_64, %c0_65, %c0_66] : memref<1x1x32xf32, #tpu.memory_space<vmem>>, vector<1x1x32xf32>
    %129 = vector.shape_cast %128 : vector<1x1x32xf32> to vector<1x32xf32>
    %cst_67 = arith.constant dense<0.000000e+00> : vector<16xf32>
    %130 = vector.multi_reduction <add>, %125, %cst_67 [1] : vector<16x32xf32> to vector<16xf32>
    %131 = vector.shape_cast %130 : vector<16xf32> to vector<16x1xf32>
    %cst_68 = arith.constant 3.200000e+01 : f32
    %132 = vector.broadcast %cst_68 : f32 to vector<16x1xf32>
    %133 = arith.divf %131, %132 : vector<16x1xf32>
    %134 = vector.broadcast %133 : vector<16x1xf32> to vector<16x32xf32>
    %135 = arith.subf %125, %134 : vector<16x32xf32>
    %136 = arith.mulf %135, %135 : vector<16x32xf32>
    %cst_69 = arith.constant dense<0.000000e+00> : vector<16xf32>
    %137 = vector.multi_reduction <add>, %136, %cst_69 [1] : vector<16x32xf32> to vector<16xf32>
    %138 = vector.shape_cast %137 : vector<16xf32> to vector<16x1xf32>
    %cst_70 = arith.constant 3.200000e+01 : f32
    %139 = vector.broadcast %cst_70 : f32 to vector<16x1xf32>
    %140 = arith.divf %138, %139 : vector<16x1xf32>
    %141 = vector.broadcast %133 : vector<16x1xf32> to vector<16x32xf32>
    %142 = arith.subf %125, %141 : vector<16x32xf32>
    %cst_71 = arith.constant 9.99999996E-13 : f32
    %143 = vector.broadcast %cst_71 : f32 to vector<16x1xf32>
    %144 = arith.addf %140, %143 : vector<16x1xf32>
    %145 = math.rsqrt %144 : vector<16x1xf32>
    %146 = vector.broadcast %145 : vector<16x1xf32> to vector<16x32xf32>
    %147 = arith.mulf %142, %146 : vector<16x32xf32>
    %148 = vector.broadcast %127 : vector<1x32xf32> to vector<16x32xf32>
    %149 = arith.mulf %147, %148 : vector<16x32xf32>
    %150 = vector.broadcast %129 : vector<1x32xf32> to vector<16x32xf32>
    %151 = arith.addf %149, %150 : vector<16x32xf32>
    %152 = arith.truncf %151 : vector<16x32xf32> to vector<16x32xbf16>
    %c0_72 = arith.constant 0 : index
    %c0_73 = arith.constant 0 : index
    %153 = vector.load %arg18[%c0_72, %c0_73] : memref<16x32xbf16, #tpu.memory_space<vmem>>, vector<16x32xbf16>
    tpu.vector_store %arg18[%c0_72, %c0_73], %152 {strides = array<i32>} : memref<16x32xbf16, #tpu.memory_space<vmem>>, vector<16x32xbf16>,
    return
  }
  func.func @transform_0(%arg0: i32, %arg1: i32) -> (i32, i32) {
    %c0_i32 = arith.constant 0 : i32
    %c0_i32_0 = arith.constant 0 : i32
    return %arg0, %c0_i32 : i32, i32
  }
  func.func @transform_1(%arg0: i32, %arg1: i32) -> (i32, i32) {
    %c0_i32 = arith.constant 0 : i32
    %c0_i32_0 = arith.constant 0 : i32
    %c0_i32_1 = arith.constant 0 : i32
    return %c0_i32, %c0_i32_0 : i32, i32
  }
  func.func @transform_2(%arg0: i32, %arg1: i32) -> (i32, i32) {
    %c0_i32 = arith.constant 0 : i32
    %c0_i32_0 = arith.constant 0 : i32
    %c0_i32_1 = arith.constant 0 : i32
    return %c0_i32, %c0_i32_0 : i32, i32
  }
  func.func @transform_3(%arg0: i32, %arg1: i32) -> (i32, i32, i32) {
    %c0_i32 = arith.constant 0 : i32
    %c0_i32_0 = arith.constant 0 : i32
    %c0_i32_1 = arith.constant 0 : i32
    return %arg0, %c0_i32, %c0_i32_0 : i32, i32, i32
  }
  func.func @transform_4(%arg0: i32, %arg1: i32) -> (i32, i32, i32) {
    %c0_i32 = arith.constant 0 : i32
    %c0_i32_0 = arith.constant 0 : i32
    %c0_i32_1 = arith.constant 0 : i32
    return %arg1, %c0_i32, %c0_i32_0 : i32, i32, i32
  }
  func.func @transform_5(%arg0: i32, %arg1: i32) -> (i32, i32, i32) {
    %c0_i32 = arith.constant 0 : i32
    %c0_i32_0 = arith.constant 0 : i32
    %c0_i32_1 = arith.constant 0 : i32
    return %arg1, %c0_i32, %c0_i32_0 : i32, i32, i32
  }
  func.func @transform_6(%arg0: i32, %arg1: i32) -> (i32, i32, i32) {
    %c0_i32 = arith.constant 0 : i32
    %c0_i32_0 = arith.constant 0 : i32
    %c0_i32_1 = arith.constant 0 : i32
    return %arg1, %c0_i32, %c0_i32_0 : i32, i32, i32
  }
  func.func @transform_7(%arg0: i32, %arg1: i32) -> (i32, i32, i32) {
    %c0_i32 = arith.constant 0 : i32
    %c0_i32_0 = arith.constant 0 : i32
    %c0_i32_1 = arith.constant 0 : i32
    return %arg1, %c0_i32, %c0_i32_0 : i32, i32, i32
  }
  func.func @transform_8(%arg0: i32, %arg1: i32) -> (i32, i32, i32) {
    %c0_i32 = arith.constant 0 : i32
    %c0_i32_0 = arith.constant 0 : i32
    %c0_i32_1 = arith.constant 0 : i32
    return %arg1, %c0_i32, %c0_i32_0 : i32, i32, i32
  }
  func.func @transform_9(%arg0: i32, %arg1: i32) -> (i32, i32, i32) {
    %c0_i32 = arith.constant 0 : i32
    %c0_i32_0 = arith.constant 0 : i32
    %c0_i32_1 = arith.constant 0 : i32
    return %arg1, %c0_i32, %c0_i32_0 : i32, i32, i32
  }
  func.func @transform_10(%arg0: i32, %arg1: i32) -> (i32, i32, i32) {
    %c0_i32 = arith.constant 0 : i32
    %c0_i32_0 = arith.constant 0 : i32
    %c0_i32_1 = arith.constant 0 : i32
    return %arg1, %c0_i32, %c0_i32_0 : i32, i32, i32
  }
  func.func @transform_11(%arg0: i32, %arg1: i32) -> (i32, i32, i32) {
    %c0_i32 = arith.constant 0 : i32
    %c0_i32_0 = arith.constant 0 : i32
    %c0_i32_1 = arith.constant 0 : i32
    return %arg1, %c0_i32, %c0_i32_0 : i32, i32, i32
  }
  func.func @transform_12(%arg0: i32, %arg1: i32) -> (i32, i32, i32) {
    %c0_i32 = arith.constant 0 : i32
    %c0_i32_0 = arith.constant 0 : i32
    %c0_i32_1 = arith.constant 0 : i32
    return %arg1, %c0_i32, %c0_i32_0 : i32, i32, i32
  }
  func.func @transform_13(%arg0: i32, %arg1: i32) -> (i32, i32, i32) {
    %c0_i32 = arith.constant 0 : i32
    %c0_i32_0 = arith.constant 0 : i32
    %c0_i32_1 = arith.constant 0 : i32
    return %arg1, %c0_i32, %c0_i32_0 : i32, i32, i32
  }
  func.func @transform_14(%arg0: i32, %arg1: i32) -> (i32, i32, i32) {
    %c0_i32 = arith.constant 0 : i32
    %c0_i32_0 = arith.constant 0 : i32
    %c0_i32_1 = arith.constant 0 : i32
    return %arg1, %c0_i32, %c0_i32_0 : i32, i32, i32
  }
  func.func @transform_15(%arg0: i32, %arg1: i32) -> (i32, i32, i32) {
    %c0_i32 = arith.constant 0 : i32
    %c0_i32_0 = arith.constant 0 : i32
    %c0_i32_1 = arith.constant 0 : i32
    return %arg1, %c0_i32, %c0_i32_0 : i32, i32, i32
  }
  func.func @transform_16(%arg0: i32, %arg1: i32) -> (i32, i32) {
    %c0_i32 = arith.constant 0 : i32
    %c0_i32_0 = arith.constant 0 : i32
    return %arg0, %c0_i32 : i32, i32
  }
}

</mosaic_0001>

<llo_original>
// kernel: span_marker_forward.3
$region0: #{span_marker_forward.3}
  #allocation0 [shape = 'u32[]', space=smem, size = 0x4, offset = 0x4, fixed_abs, tag = 'smem constant byte address 0x4 - core index']
  #allocation1 [shape = 'u32[144,128]{1,0:T(1,128)}', space=vmem, size = 0x12000, scoped, tag = 'internal scratch']
  #allocation2 [shape = 's32[1]{0}', space=sflag, size = 0x4, scoped, tag = 'scoped memory for span_marker_forward.3']
  #allocation3 [shape = 'u8[512]{0}', space=smem, size = 0x200, scoped, tag = 'prefetched SMEM operand 0']
  #allocation4 [shape = 'u8[512]{0}', space=smem, size = 0x200, scoped, tag = 'prefetched SMEM operand 1']
  %s0 = inlined_call_operand.vmem [shape: s32[2], index: 0, kind: input, shape index: {}]
  %s1 = inlined_call_operand.vmem [shape: s32[2], index: 1, kind: input, shape index: {}]
  %s2 = inlined_call_operand.vmem [shape: bf16[2,16,32], index: 2, kind: input, shape index: {}]
  %s3 = inlined_call_operand.vmem [shape: bf16[64,128], index: 3, kind: input, shape index: {}]
  %s4 = inlined_call_operand.vmem [shape: f32[1,128], index: 4, kind: input, shape index: {}]
  %s5 = inlined_call_operand.hbm [shape: f32[2,8,128], index: 5, kind: output, shape index: {}]
  %s6 = sld [smem:[#allocation0]]
  $region45: #{span_marker_forward.3} parent=0
    _
  %s8 = ssub.s32 1, %s6
  %s9 = scalar_select 0, %s8, %s6
  %s10 = sshll.u32 %s0, 4
  %s11 = int_to_ptr.vmem [resolvable:$true] %s10
  %13 = dma.vmem_to_smem %s11, 16, [#allocation3], [#allocation2]
  %s14 = sshll.u32 %s1, 4
  %s15 = int_to_ptr.vmem [resolvable:$true] %s14
  %17 = dma.vmem_to_smem %s15, 16, [#allocation4], [#allocation2]
  %18 = dma.done [#allocation2], 32
  %19 = sfence
  $region1: #{span_marker_forward.3} parent=0
    #allocation5 [shape = 'u8[8192]{0}', space=vmem, size = 0x2000, scoped, tag = 'output window, operand 0']
    #allocation6 [shape = 's32[2]{0}', space=sflag, size = 0x8, scoped, tag = 'scoped memory for span_marker_forward.3']
    %20 = vsyncpa [#allocation6], 0
    %s21 = scalar_lea.sflag [#allocation6], 1
    %22 = vsyncpa %s21, 0
    loop: start=0, step=1, limit=4
    $region2: #{span_marker_forward.3} parent=1 // loop_pre_header
      _
    $region3: #{span_marker_forward.3} parent=1 // loop_header
      %s24 = sphi 0, %s28
      %p25 = scmp.ge.s32.totalorder %s24, 4
      %s34 = sphi 0, %s36
      %s37 = sphi 0, %s34
      %s38 = sphi 0, %s37
      %s54 = sphi 0, %s38
      %s58 = sphi 0, %s58
      %s60 = sphi 0, %s58
      %s61 = sphi 0, %s60
      %s75 = sphi 0, %s61
      %s79 = sphi 0, %s79
      %s81 = sphi 0, %s79
      %s82 = sphi 0, %s81
      %s96 = sphi 0, %s82
      %s102 = sphi 0, %s104
      %s105 = sphi 0, %s102
      %s106 = sphi 0, %s105
      %s122 = sphi 0, %s106
    $region4: #{span_marker_forward.3} parent=1 // loop_header_branch
      %27 = sbr.rel (%p25) target = $region8
    $region5: #{span_marker_forward.3} parent=1 // loop_body
      %s29 = ssub.s32 %s24, 1
      %s30 = ssub.s32 %s24, 2
      %s31 = sadd.s32 %s24, 1
      %s32 = ssub.s32 %s24, %s31
      %p33 = scmp.eq.s32.totalorder %s32, 0
      %s35 = sadd.s32 %s34, 1
      %s36 = scalar_select %p33, %s34, %s35
      %p39 = pneg %p33
      %p40 = scmp.eq.s32.totalorder %s24, 1
      %p41 = por %p39, %p40
      %p42 = scmp.ne.s32.totalorder %s34, %s37
      %p43 = scmp.eq.s32.totalorder %s24, 0
      %p44 = por %p42, %p43
      %p45 = scmp.ne.s32.totalorder %s34, %s37
      %p46 = scmp.eq.s32.totalorder %s29, 1
      %p47 = por %p45, %p46
      %p48 = scmp.ne.s32.totalorder %s37, %s38
      %p49 = scmp.eq.s32.totalorder %s29, 0
      %p50 = por %p48, %p49
      %p51 = scmp.ne.s32.totalorder %s37, %s38
      %p52 = scmp.eq.s32.totalorder %s30, 1
      %p53 = por %p51, %p52
      %p55 = scmp.ne.s32.totalorder %s38, %s54
      %p56 = scmp.eq.s32.totalorder %s30, 0
      %p57 = por %p55, %p56
      %s59 = sadd.s32 %s58, 1
      %p62 = scmp.eq.s32.totalorder %s24, 1
      %p63 = scmp.ne.s32.totalorder %s58, %s60
      %p64 = scmp.eq.s32.totalorder %s24, 0
      %p65 = por %p63, %p64
      %p66 = scmp.ne.s32.totalorder %s58, %s60
      %p67 = scmp.eq.s32.totalorder %s29, 1
      %p68 = por %p66, %p67
      %p69 = scmp.ne.s32.totalorder %s60, %s61
      %p70 = scmp.eq.s32.totalorder %s29, 0
      %p71 = por %p69, %p70
      %p72 = scmp.ne.s32.totalorder %s60, %s61
      %p73 = scmp.eq.s32.totalorder %s30, 1
      %p74 = por %p72, %p73
      %p76 = scmp.ne.s32.totalorder %s61, %s75
      %p77 = scmp.eq.s32.totalorder %s30, 0
      %p78 = por %p76, %p77
      %s80 = sadd.s32 %s79, 1
      %p83 = scmp.eq.s32.totalorder %s24, 1
      %p84 = scmp.ne.s32.totalorder %s79, %s81
      %p85 = scmp.eq.s32.totalorder %s24, 0
      %p86 = por %p84, %p85
      %p87 = scmp.ne.s32.totalorder %s79, %s81
      %p88 = scmp.eq.s32.totalorder %s29, 1
      %p89 = por %p87, %p88
      %p90 = scmp.ne.s32.totalorder %s81, %s82
      %p91 = scmp.eq.s32.totalorder %s29, 0
      %p92 = por %p90, %p91
      %p93 = scmp.ne.s32.totalorder %s81, %s82
      %p94 = scmp.eq.s32.totalorder %s30, 1
      %p95 = por %p93, %p94
      %p97 = scmp.ne.s32.totalorder %s82, %s96
      %p98 = scmp.eq.s32.totalorder %s30, 0
      %p99 = por %p97, %p98
      %s100 = ssub.s32 %s24, %s31
      %p101 = scmp.eq.s32.totalorder %s100, 0
      %s103 = sadd.s32 %s102, 1
      %s104 = scalar_select %p101, %s102, %s103
      %p107 = pneg %p101
      %p108 = scmp.eq.s32.totalorder %s24, 1
      %p109 = por %p107, %p108
      %p110 = scmp.ne.s32.totalorder %s102, %s105
      %p111 = scmp.eq.s32.totalorder %s24, 0
      %p112 = por %p110, %p111
      %p113 = scmp.ne.s32.totalorder %s102, %s105
      %p114 = scmp.eq.s32.totalorder %s29, 1
      %p115 = por %p113, %p114
      %p116 = scmp.ne.s32.totalorder %s105, %s106
      %p117 = scmp.eq.s32.totalorder %s29, 0
      %p118 = por %p116, %p117
      %p119 = scmp.ne.s32.totalorder %s105, %s106
      %p120 = scmp.eq.s32.totalorder %s30, 1
      %p121 = por %p119, %p120
      %p123 = scmp.ne.s32.totalorder %s106, %s122
      %p124 = scmp.eq.s32.totalorder %s30, 0
      %p125 = por %p123, %p124
      %p126 = scmp.le.s32.totalorder 1, %s24
      %p127 = scmp.lt.s32.totalorder %s24, 3
      %p128 = pnand %p126, %p127
      %p129 = pneg %p128
      // Predicated region
      $region9: #{span_marker_forward.3} parent=5 // pred_check
        _
      $region10: #{span_marker_forward.3} parent=5 // pred_check_branch
        %131 = sbr.rel (%p128) target = $region12
      $region11: #{span_marker_forward.3} parent=5 // pred_region
        %s132 = ssub.s32 %s24, 1
        // Predicated region
        $region13: #{span_marker_forward.3} parent=11 // pred_check
          %p133 = pneg %p71
        $region14: #{span_marker_forward.3} parent=11 // pred_check_branch
          %135 = sbr.rel (%p133) target = $region16
        $region15: #{span_marker_forward.3} parent=11 // pred_region
          _
        $region16: #{span_marker_forward.3} parent=11 // pred_fallthru
          _
        // Predicated region
        $region17: #{span_marker_forward.3} parent=11 // pred_check
          %p136 = pneg %p92
        $region18: #{span_marker_forward.3} parent=11 // pred_check_branch
          %138 = sbr.rel (%p136) target = $region20
        $region19: #{span_marker_forward.3} parent=11 // pred_region
          _
        $region20: #{span_marker_forward.3} parent=11 // pred_fallthru
          _
      $region12: #{span_marker_forward.3} parent=5 // pred_fallthru
        _
      %p139 = scmp.lt.s32.totalorder %s24, 2
      // Predicated region
      $region21: #{span_marker_forward.3} parent=5 // pred_check
        %p140 = pneg %p139
      $region22: #{span_marker_forward.3} parent=5 // pred_check_branch
        %142 = sbr.rel (%p140) target = $region24
      $region23: #{span_marker_forward.3} parent=5 // pred_region
        // Predicated region
        $region25: #{span_marker_forward.3} parent=23 // pred_check
          %p143 = pneg %p44
        $region26: #{span_marker_forward.3} parent=23 // pred_check_branch
          %145 = sbr.rel (%p143) target = $region28
        $region27: #{span_marker_forward.3} parent=23 // pred_region
          %p146 = scmp.lt.s32.totalorder %s24, 1
          %s147 = scalar_select %p146, %s24, 1
          %s148 = smul.addr %s147, 2
          %s149 = smul.addr %s148, 4
          %s150 = scalar_lea.vmem %s2, %s149
        $region28: #{span_marker_forward.3} parent=23 // pred_fallthru
          _
      $region24: #{span_marker_forward.3} parent=5 // pred_fallthru
        _
      %p151 = scmp.le.s32.totalorder 1, %s24
      %p152 = scmp.lt.s32.totalorder %s24, 3
      %p153 = pnand %p151, %p152
      %p154 = pneg %p153
      // Predicated region
      $region29: #{span_marker_forward.3} parent=5 // pred_check
        _
      $region30: #{span_marker_forward.3} parent=5 // pred_check_branch
        %156 = sbr.rel (%p153) target = $region32
      $region31: #{span_marker_forward.3} parent=5 // pred_region
        %s157 = ssub.s32 %s24, 1
        %p158 = scmp.lt.s32.totalorder %s29, 1
        %s159 = scalar_select %p158, %s29, 1
        %s160 = smul.addr %s159, 2
        %s161 = smul.addr %s160, 4
        %s162 = scalar_lea.vmem %s2, %s161
        %p163 = pneg %p50
        %p164 = pneg %p47
        %p165 = pneg %p71
        %p166 = pneg %p68
        %p167 = pneg %p92
        %p168 = pneg %p89
        %p169 = pneg %p118
        %p170 = pneg %p115
        %s171 = sand.u32 %s105, 1
        %s172 = scalar_lea.sflag [#allocation6], %s171
        %s173 = sand.u32 %s105, 1
        %s174 = smul.addr %s173, 8
        %s175 = scalar_lea.vmem [#allocation5], %s174
        %p176 = scmp.lt.s32.totalorder %s29, 1
        %s177 = scalar_select %p176, %s29, 1
        %s178 = smul.addr %s177, 2
        %s179 = smul.addr %s178, 4
        %s180 = scalar_lea.vmem %s2, %s179
        %s182 = sld [smem:[#allocation3 + %s29]]
        %s183 = sld [smem:[#allocation4 + %s29]]
        %v184 = vld [vmem:[%s180] sm:$0xf]
        %v185 = vld [vmem:[%s180 + $0x4] sm:$0xf]
        %v186 = vlaneseq
        %v187 = vshrl.u32 %v186, 7
        %v188 = vadd.s32 %v187, 8
        %v189 = vlaneseq
        %v190 = vand.u32 %v189, 127
        %vm191 = vcmp.lt.s32.totalorder %v187, 8
        %vm192 = vcmp.lt.s32.totalorder %v188, 8
        %v193 = vsub.s32 %v187, 8
        %v194 = vsel %vm191, %v187, %v193
        %v195 = vsel %vm192, %v188, %v187
        %s196 = sadd.s32 %s182, %s183
        %v197 = vstv %s182
        %v198 = vstv %s196
        %v199 = vsel %vm191, %v197, %v198
        %v200 = vsel %vm192, %v197, %v198
        %v201 = vstv %s183
        %vm202 = vcmp.lt.s32.totalorder %v194, %v201
        %vm203 = vcmp.lt.s32.totalorder %v195, %v201
        %v204 = vadd.s32 %v199, %v194
        %v205 = vadd.s32 %v200, %v195
        %vm206 = vcmp.eq.s32.totalorder %v190, %v204
        %vm207 = vcmp.eq.s32.totalorder %v190, %v205
        %vm208 = vmand %vm202, %vm206
        %vm209 = vmand %vm203, %vm207
        %v210 = vsel %vm208, 1.0, 0.0
        %v211 = vsel %vm209, 1.0, 0.0
        %v212 = vpack.c.bf16 %v211, %v210
        %v215 = vunpack.c.l.b16 %v184
        %v216 = vunpack.c.l.b16 %v185
        %v217 = vpack.c.b16 %v216, %v215
        %vm219 = vcmask 130048
        %v221 = vsel %vm219, %v212, 0
        %223 = vmatprep.subr.bf16.mxu0 0
        %224 = vmatpush1.bf16.msra.mxu0 0
        %225 = vmatprep.subr.bf16.mxu0 0
        %226 = vmatpush1.bf16.msra.mxu0 0
        %227 = vmatprep.subr.bf16.mxu0 0
        %228 = vmatpush1.bf16.msra.mxu0 0
        %229 = vmatprep.subr.bf16.mxu0 0
        %230 = vmatpush1.bf16.msra.mxu0 0
        %231 = vmatprep.subr.bf16.mxu0 0
        %232 = vmatpush1.bf16.msra.mxu0 0
        %233 = vmatprep.subr.bf16.mxu0 0
        %234 = vmatpush1.bf16.msra.mxu0 0
        %235 = vmatprep.subr.bf16.mxu0 0
        %236 = vmatpush1.bf16.msra.mxu0 0
        %237 = vmatprep.subr.bf16.mxu0 0
        %238 = vmatpush1.bf16.msra.mxu0 %v217
        %239 = vmatprep.subr.bf16.mxu0 0
        %240 = vmatpush2.bf16.msra.mxu0 0
        %241 = vmatprep.subr.bf16.mxu0 0
        %242 = vmatpush2.bf16.msra.mxu0 0
        %243 = vmatprep.subr.bf16.mxu0 0
        %244 = vmatpush2.bf16.msra.mxu0 0
        %245 = vmatprep.subr.bf16.mxu0 0
        %246 = vmatpush2.bf16.msra.mxu0 0
        %247 = vmatprep.subr.bf16.mxu0 0
        %248 = vmatpush2.bf16.msra.mxu0 0
        %249 = vmatprep.subr.bf16.mxu0 0
        %250 = vmatpush2.bf16.msra.mxu0 0
        %251 = vmatprep.subr.bf16.mxu0 0
        %252 = vmatpush2.bf16.msra.mxu0 0
        %253 = vmatprep.subr.bf16.mxu0 0
        %254 = vmatpush2.bf16.msra.mxu0 0
        %255 = vmatprep.mubr.bf16.mxu0 0
        %256 = vmatmul.mubr.bf16.gmra.mxu0 %v221
        %v257 = vpop.f32.mrf.mxu0
        %v258 = vadd.f32 0.0, %v257
        %v259 = vpop.f32.mrf.mxu0
        %v260 = vpop.f32.mrf.mxu0
        %v261 = vadd.f32 0.0, %v260
        %v262 = vpop.f32.mrf.mxu0
        %263 = vdwg.mxu0
        %v264 = vpack.c.bf16 %v258, %v258
        %v265 = vpack.c.bf16 %v261, %v261
        %v266 = vld [vmem:[%s3] sm:$0xf]
        %v267 = vld [vmem:[%s3 + $0x4] sm:$0xf]
        %v268 = vld [vmem:[%s3 + $0x8] sm:$0xf]
        %v269 = vld [vmem:[%s3 + $0xc] sm:$0xf]
        %v270 = vld [vmem:[%s3 + $0x10] sm:$0xf]
        %v271 = vld [vmem:[%s3 + $0x14] sm:$0xf]
        %v272 = vld [vmem:[%s3 + $0x18] sm:$0xf]
        %v273 = vld [vmem:[%s3 + $0x1c] sm:$0xf]
        %v278 = vunpack.c.l.b16 %v270
        %v279 = vunpack.c.l.b16 %v271
        %v280 = vunpack.c.l.b16 %v272
        %v281 = vunpack.c.l.b16 %v273
        %v282 = vpack.c.b16 %v279, %v278
        %v283 = vpack.c.b16 %v281, %v280
        %vm286 = vcmask 261120
        %v288 = vsel %vm286, %v265, 0
        %290 = vmatprep.subr.bf16.mxu0 0
        %291 = vmatpush1.bf16.msra.mxu0 0
        %292 = vmatprep.subr.bf16.mxu0 0
        %293 = vmatpush1.bf16.msra.mxu0 0
        %294 = vmatprep.subr.bf16.mxu0 0
        %295 = vmatpush1.bf16.msra.mxu0 0
        %296 = vmatprep.subr.bf16.mxu0 0
        %297 = vmatpush1.bf16.msra.mxu0 0
        %298 = vmatprep.subr.bf16.mxu0 0
        %299 = vmatpush1.bf16.msra.mxu0 0
        %300 = vmatprep.subr.bf16.mxu0 0
        %301 = vmatpush1.bf16.msra.mxu0 0
        %302 = vmatprep.subr.bf16.mxu0 0
        %303 = vmatpush1.bf16.msra.mxu0 %v283
        %304 = vmatprep.subr.bf16.mxu0 0
        %305 = vmatpush1.bf16.msra.mxu0 %v282
        %306 = vmatprep.subr.bf16.mxu0 0
        %307 = vmatpush2.bf16.msra.mxu0 0
        %308 = vmatprep.subr.bf16.mxu0 0
        %309 = vmatpush2.bf16.msra.mxu0 0
        %310 = vmatprep.subr.bf16.mxu0 0
        %311 = vmatpush2.bf16.msra.mxu0 0
        %312 = vmatprep.subr.bf16.mxu0 0
        %313 = vmatpush2.bf16.msra.mxu0 0
        %314 = vmatprep.subr.bf16.mxu0 0
        %315 = vmatpush2.bf16.msra.mxu0 0
        %316 = vmatprep.subr.bf16.mxu0 0
        %317 = vmatpush2.bf16.msra.mxu0 0
        %318 = vmatprep.subr.bf16.mxu0 0
        %319 = vmatpush2.bf16.msra.mxu0 0
        %320 = vmatprep.subr.bf16.mxu0 0
        %321 = vmatpush2.bf16.msra.mxu0 0
        %322 = vmatprep.mubr.bf16.mxu0 0
        %323 = vmatmul.mubr.bf16.gmra.mxu0 %v288
        %v324 = vpop.f32.mrf.mxu0
        %v325 = vadd.f32 0.0, %v324
        %v326 = vpop.f32.mrf.mxu0
        %v327 = vpop.f32.mrf.mxu0
        %v328 = vpop.f32.mrf.mxu0
        %329 = vdwg.mxu0
        %v334 = vunpack.c.l.b16 %v266
        %v335 = vunpack.c.l.b16 %v267
        %v336 = vunpack.c.l.b16 %v268
        %v337 = vunpack.c.l.b16 %v269
        %v338 = vpack.c.b16 %v335, %v334
        %v339 = vpack.c.b16 %v337, %v336
        %v343 = vsel %vm286, %v264, 0
        %345 = vmatprep.subr.bf16.mxu0 0
        %346 = vmatpush1.bf16.msra.mxu0 0
        %347 = vmatprep.subr.bf16.mxu0 0
        %348 = vmatpush1.bf16.msra.mxu0 0
        %349 = vmatprep.subr.bf16.mxu0 0
        %350 = vmatpush1.bf16.msra.mxu0 0
        %351 = vmatprep.subr.bf16.mxu0 0
        %352 = vmatpush1.bf16.msra.mxu0 0
        %353 = vmatprep.subr.bf16.mxu0 0
        %354 = vmatpush1.bf16.msra.mxu0 0
        %355 = vmatprep.subr.bf16.mxu0 0
        %356 = vmatpush1.bf16.msra.mxu0 0
        %357 = vmatprep.subr.bf16.mxu0 0
        %358 = vmatpush1.bf16.msra.mxu0 %v339
        %359 = vmatprep.subr.bf16.mxu0 0
        %360 = vmatpush1.bf16.msra.mxu0 %v338
        %361 = vmatprep.subr.bf16.mxu0 0
        %362 = vmatpush2.bf16.msra.mxu0 0
        %363 = vmatprep.subr.bf16.mxu0 0
        %364 = vmatpush2.bf16.msra.mxu0 0
        %365 = vmatprep.subr.bf16.mxu0 0
        %366 = vmatpush2.bf16.msra.mxu0 0
        %367 = vmatprep.subr.bf16.mxu0 0
        %368 = vmatpush2.bf16.msra.mxu0 0
        %369 = vmatprep.subr.bf16.mxu0 0
        %370 = vmatpush2.bf16.msra.mxu0 0
        %371 = vmatprep.subr.bf16.mxu0 0
        %372 = vmatpush2.bf16.msra.mxu0 0
        %373 = vmatprep.subr.bf16.mxu0 0
        %374 = vmatpush2.bf16.msra.mxu0 0
        %375 = vmatprep.subr.bf16.mxu0 0
        %376 = vmatpush2.bf16.msra.mxu0 0
        %377 = vmatprep.mubr.bf16.mxu0 0
        %378 = vmatmul.mubr.bf16.gmra.mxu0 %v343
        %v379 = vpop.f32.mrf.mxu0
        %v380 = vadd.f32 %v325, %v379
        %v381 = vpop.f32.mrf.mxu0
        %v382 = vpop.f32.mrf.mxu0
        %v383 = vpop.f32.mrf.mxu0
        %384 = vdwg.mxu0
        %v385 = vld [vmem:[%s4] sm:$0x1]
        %v387 = vlaneseq
        %v388 = vshrl.u32 %v387, 7
        %v389 = vsub.s32 0, %v388
        %v390 = vrot.slane %v385, %v389
        %v392 = vadd.f32 %v380, %v390
        %393 = vst [vmem:[%s175] sm:$0xff] %v392
        %s394 = sand.u32 %s105, 1
        %s395 = scalar_lea.sflag [#allocation6], %s394
        %s396 = sand.u32 %s105, 1
        %s397 = smul.addr %s396, 8
        %s398 = scalar_lea.vmem [#allocation5], %s397
        // Predicated region
        $region33: #{span_marker_forward.3} parent=31 // pred_check
          %p399 = pneg %p115
        $region34: #{span_marker_forward.3} parent=31 // pred_check_branch
          %401 = sbr.rel (%p399) target = $region36
        $region35: #{span_marker_forward.3} parent=31 // pred_region
          %s403 = ssub.s32 128, 128
          %404 = vsyncadd %s395, %s403
          %s405 = smul.addr %s29, 128
          %s406 = scalar_lea.hbm %s5, %s405
          %s408 = sshll.u32 %s398, 4
          %s409 = int_to_ptr.vmem [resolvable:$true] %s408
          %411 = dma.vmem_to_hbm [thread:$0]  %s409, 128, %s406, %s395
        $region36: #{span_marker_forward.3} parent=31 // pred_fallthru
          _
      $region32: #{span_marker_forward.3} parent=5 // pred_fallthru
        _
      %p412 = scmp.le.s32.totalorder 2, %s24
      // Predicated region
      $region37: #{span_marker_forward.3} parent=5 // pred_check
        %p413 = pneg %p412
      $region38: #{span_marker_forward.3} parent=5 // pred_check_branch
        %415 = sbr.rel (%p413) target = $region40
      $region39: #{span_marker_forward.3} parent=5 // pred_region
        %s416 = ssub.s32 %s24, 2
        // Predicated region
        $region41: #{span_marker_forward.3} parent=39 // pred_check
          %p417 = pneg %p121
        $region42: #{span_marker_forward.3} parent=39 // pred_check_branch
          %419 = sbr.rel (%p417) target = $region44
        $region43: #{span_marker_forward.3} parent=39 // pred_region
          %s420 = sand.u32 %s106, 1
          %s421 = scalar_lea.sflag [#allocation6], %s420
          %s422 = sand.u32 %s106, 1
          %s423 = smul.addr %s422, 8
          %s424 = scalar_lea.vmem [#allocation5], %s423
          %425 = dma.done %s421, 128
        $region44: #{span_marker_forward.3} parent=39 // pred_fallthru
          _
      $region40: #{span_marker_forward.3} parent=5 // pred_fallthru
        _
    $region6: #{span_marker_forward.3} parent=1 // loop_footer
      %s28 = sadd.s32 1, %s24
    $region7: #{span_marker_forward.3} parent=1 // loop_footer_branch
      %23 = sbr.rel target = $region3
    $region8: #{span_marker_forward.3} parent=1 // loop_exit
      _
    %426 = vsyncpa [#allocation6], 1
    %s427 = scalar_lea.sflag [#allocation6], 1
    %428 = vsyncpa %s427, 1

// kernel: span_marker_forward.2
$region0: #{span_marker_forward.2}
  #allocation0 [shape = 'u32[]', space=smem, size = 0x4, offset = 0x4, fixed_abs, tag = 'smem constant byte address 0x4 - core index']
  #allocation1 [shape = 'u32[144,128]{1,0:T(1,128)}', space=vmem, size = 0x12000, scoped, tag = 'internal scratch']
  %s0 = inlined_call_operand.vmem [shape: bf16[32,32], index: 0, kind: input, shape index: {}]
  %s1 = inlined_call_operand.vmem [shape: f32[1,32], index: 1, kind: input, shape index: {}]
  %s2 = inlined_call_operand.vmem [shape: f32[1,32], index: 2, kind: input, shape index: {}]
  %s3 = inlined_call_operand.vmem [shape: bf16[2,16,16], index: 3, kind: input, shape index: {}]
  %s4 = inlined_call_operand.vmem [shape: bf16[2,32,96], index: 4, kind: input, shape index: {}]
  %s5 = inlined_call_operand.vmem [shape: f32[2,1,96], index: 5, kind: input, shape index: {}]
  %s6 = inlined_call_operand.vmem [shape: bf16[2,32,32], index: 6, kind: input, shape index: {}]
  %s7 = inlined_call_operand.vmem [shape: f32[2,1,32], index: 7, kind: input, shape index: {}]
  %s8 = inlined_call_operand.vmem [shape: f32[2,1,32], index: 8, kind: input, shape index: {}]
  %s9 = inlined_call_operand.vmem [shape: f32[2,1,32], index: 9, kind: input, shape index: {}]
  %s10 = inlined_call_operand.vmem [shape: bf16[2,32,64], index: 10, kind: input, shape index: {}]
  %s11 = inlined_call_operand.vmem [shape: f32[2,1,64], index: 11, kind: input, shape index: {}]
  %s12 = inlined_call_operand.vmem [shape: bf16[2,64,32], index: 12, kind: input, shape index: {}]
  %s13 = inlined_call_operand.vmem [shape: f32[2,1,32], index: 13, kind: input, shape index: {}]
  %s14 = inlined_call_operand.vmem [shape: f32[2,1,32], index: 14, kind: input, shape index: {}]
  %s15 = inlined_call_operand.vmem [shape: f32[2,1,32], index: 15, kind: input, shape index: {}]
  %s16 = inlined_call_operand.vmem [shape: bf16[32,32], index: 16, kind: output, shape index: {}]
  %s17 = sld [smem:[#allocation0]]
  $region101: #{span_marker_forward.2} parent=0
    _
  %s19 = ssub.s32 1, %s17
  %s20 = scalar_select 0, %s19, %s17
  loop: start=0, step=1, limit=6
  $region2: #{span_marker_forward.2} parent=0 // loop_pre_header
    _
  $region3: #{span_marker_forward.2} parent=0 // loop_header
    %s22 = sphi 0, %s26
    %p23 = scmp.ge.s32.totalorder %s22, 6
    %s29 = sphi 0, %s41
    %s30 = sphi 0, %s37
    %s31 = sphi 0, %s29
    %s32 = sphi 0, %s30
    %s33 = sphi 0, %s31
    %s34 = sphi 0, %s32
    %s44 = sphi 0, %s46
    %s47 = sphi 0, %s44
    %s48 = sphi 0, %s47
    %s64 = sphi 0, %s48
    %s68 = sphi 0, %s68
    %s70 = sphi 0, %s68
    %s71 = sphi 0, %s70
    %s85 = sphi 0, %s71
    %s89 = sphi 0, %s89
    %s91 = sphi 0, %s89
    %s92 = sphi 0, %s91
    %s106 = sphi 0, %s92
    %s112 = sphi 0, %s114
    %s115 = sphi 0, %s112
    %s116 = sphi 0, %s115
    %s132 = sphi 0, %s116
    %s138 = sphi 0, %s140
    %s141 = sphi 0, %s138
    %s142 = sphi 0, %s141
    %s158 = sphi 0, %s142
    %s164 = sphi 0, %s166
    %s167 = sphi 0, %s164
    %s168 = sphi 0, %s167
    %s184 = sphi 0, %s168
    %s190 = sphi 0, %s192
    %s193 = sphi 0, %s190
    %s194 = sphi 0, %s193
    %s210 = sphi 0, %s194
    %s216 = sphi 0, %s218
    %s219 = sphi 0, %s216
    %s220 = sphi 0, %s219
    %s236 = sphi 0, %s220
    %s242 = sphi 0, %s244
    %s245 = sphi 0, %s242
    %s246 = sphi 0, %s245
    %s262 = sphi 0, %s246
    %s268 = sphi 0, %s270
    %s271 = sphi 0, %s268
    %s272 = sphi 0, %s271
    %s288 = sphi 0, %s272
    %s294 = sphi 0, %s296
    %s297 = sphi 0, %s294
    %s298 = sphi 0, %s297
    %s314 = sphi 0, %s298
    %s320 = sphi 0, %s322
    %s323 = sphi 0, %s320
    %s324 = sphi 0, %s323
    %s340 = sphi 0, %s324
    %s346 = sphi 0, %s348
    %s349 = sphi 0, %s346
    %s350 = sphi 0, %s349
    %s366 = sphi 0, %s350
    %s372 = sphi 0, %s374
    %s375 = sphi 0, %s372
    %s376 = sphi 0, %s375
    %s392 = sphi 0, %s376
    %s398 = sphi 0, %s400
    %s401 = sphi 0, %s398
    %s402 = sphi 0, %s401
    %s418 = sphi 0, %s402
    %s424 = sphi 0, %s426
    %s427 = sphi 0, %s424
    %s428 = sphi 0, %s427
    %s444 = sphi 0, %s428
    %s450 = sphi 0, %s452
    %s453 = sphi 0, %s450
    %s454 = sphi 0, %s453
    %s470 = sphi 0, %s454
  $region4: #{span_marker_forward.2} parent=0 // loop_header_branch
    %25 = sbr.rel (%p23) target = $region8
  $region5: #{span_marker_forward.2} parent=0 // loop_body
    %s27 = ssub.s32 %s22, 1
    %s28 = ssub.s32 %s22, 2
    %s35 = sadd.s32 1, %s30
    %p36 = scmp.ge.s32.totalorder %s35, 2
    %s37 = scalar_select %p36, 0, %s35
    %s38 = sadd.s32 1, %s29
    %s39 = scalar_select %p36, %s38, %s29
    %p40 = scmp.ge.s32.totalorder %s39, 2
    %s41 = scalar_select %p40, 0, %s39
    %s42 = ssub.s32 %s29, %s41
    %p43 = scmp.eq.s32.totalorder %s42, 0
    %s45 = sadd.s32 %s44, 1
    %s46 = scalar_select %p43, %s44, %s45
    %p49 = pneg %p43
    %p50 = scmp.eq.s32.totalorder %s22, 3
    %p51 = por %p49, %p50
    %p52 = scmp.ne.s32.totalorder %s44, %s47
    %p53 = scmp.eq.s32.totalorder %s22, 0
    %p54 = por %p52, %p53
    %p55 = scmp.ne.s32.totalorder %s44, %s47
    %p56 = scmp.eq.s32.totalorder %s27, 3
    %p57 = por %p55, %p56
    %p58 = scmp.ne.s32.totalorder %s47, %s48
    %p59 = scmp.eq.s32.totalorder %s27, 0
    %p60 = por %p58, %p59
    %p61 = scmp.ne.s32.totalorder %s47, %s48
    %p62 = scmp.eq.s32.totalorder %s28, 3
    %p63 = por %p61, %p62
    %p65 = scmp.ne.s32.totalorder %s48, %s64
    %p66 = scmp.eq.s32.totalorder %s28, 0
    %p67 = por %p65, %p66
    %s69 = sadd.s32 %s68, 1
    %p72 = scmp.eq.s32.totalorder %s22, 3
    %p73 = scmp.ne.s32.totalorder %s68, %s70
    %p74 = scmp.eq.s32.totalorder %s22, 0
    %p75 = por %p73, %p74
    %p76 = scmp.ne.s32.totalorder %s68, %s70
    %p77 = scmp.eq.s32.totalorder %s27, 3
    %p78 = por %p76, %p77
    %p79 = scmp.ne.s32.totalorder %s70, %s71
    %p80 = scmp.eq.s32.totalorder %s27, 0
    %p81 = por %p79, %p80
    %p82 = scmp.ne.s32.totalorder %s70, %s71
    %p83 = scmp.eq.s32.totalorder %s28, 3
    %p84 = por %p82, %p83
    %p86 = scmp.ne.s32.totalorder %s71, %s85
    %p87 = scmp.eq.s32.totalorder %s28, 0
    %p88 = por %p86, %p87
    %s90 = sadd.s32 %s89, 1
    %p93 = scmp.eq.s32.totalorder %s22, 3
    %p94 = scmp.ne.s32.totalorder %s89, %s91
    %p95 = scmp.eq.s32.totalorder %s22, 0
    %p96 = por %p94, %p95
    %p97 = scmp.ne.s32.totalorder %s89, %s91
    %p98 = scmp.eq.s32.totalorder %s27, 3
    %p99 = por %p97, %p98
    %p100 = scmp.ne.s32.totalorder %s91, %s92
    %p101 = scmp.eq.s32.totalorder %s27, 0
    %p102 = por %p100, %p101
    %p103 = scmp.ne.s32.totalorder %s91, %s92
    %p104 = scmp.eq.s32.totalorder %s28, 3
    %p105 = por %p103, %p104
    %p107 = scmp.ne.s32.totalorder %s92, %s106
    %p108 = scmp.eq.s32.totalorder %s28, 0
    %p109 = por %p107, %p108
    %s110 = ssub.s32 %s29, %s41
    %p111 = scmp.eq.s32.totalorder %s110, 0
    %s113 = sadd.s32 %s112, 1
    %s114 = scalar_select %p111, %s112, %s113
    %p117 = pneg %p111
    %p118 = scmp.eq.s32.totalorder %s22, 3
    %p119 = por %p117, %p118
    %p120 = scmp.ne.s32.totalorder %s112, %s115
    %p121 = scmp.eq.s32.totalorder %s22, 0
    %p122 = por %p120, %p121
    %p123 = scmp.ne.s32.totalorder %s112, %s115
    %p124 = scmp.eq.s32.totalorder %s27, 3
    %p125 = por %p123, %p124
    %p126 = scmp.ne.s32.totalorder %s115, %s116
    %p127 = scmp.eq.s32.totalorder %s27, 0
    %p128 = por %p126, %p127
    %p129 = scmp.ne.s32.totalorder %s115, %s116
    %p130 = scmp.eq.s32.totalorder %s28, 3
    %p131 = por %p129, %p130
    %p133 = scmp.ne.s32.totalorder %s116, %s132
    %p134 = scmp.eq.s32.totalorder %s28, 0
    %p135 = por %p133, %p134
    %s136 = ssub.s32 %s30, %s37
    %p137 = scmp.eq.s32.totalorder %s136, 0
    %s139 = sadd.s32 %s138, 1
    %s140 = scalar_select %p137, %s138, %s139
    %p143 = pneg %p137
    %p144 = scmp.eq.s32.totalorder %s22, 3
    %p145 = por %p143, %p144
    %p146 = scmp.ne.s32.totalorder %s138, %s141
    %p147 = scmp.eq.s32.totalorder %s22, 0
    %p148 = por %p146, %p147
    %p149 = scmp.ne.s32.totalorder %s138, %s141
    %p150 = scmp.eq.s32.totalorder %s27, 3
    %p151 = por %p149, %p150
    %p152 = scmp.ne.s32.totalorder %s141, %s142
    %p153 = scmp.eq.s32.totalorder %s27, 0
    %p154 = por %p152, %p153
    %p155 = scmp.ne.s32.totalorder %s141, %s142
    %p156 = scmp.eq.s32.totalorder %s28, 3
    %p157 = por %p155, %p156
    %p159 = scmp.ne.s32.totalorder %s142, %s158
    %p160 = scmp.eq.s32.totalorder %s28, 0
    %p161 = por %p159, %p160
    %s162 = ssub.s32 %s30, %s37
    %p163 = scmp.eq.s32.totalorder %s162, 0
    %s165 = sadd.s32 %s164, 1
    %s166 = scalar_select %p163, %s164, %s165
    %p169 = pneg %p163
    %p170 = scmp.eq.s32.totalorder %s22, 3
    %p171 = por %p169, %p170
    %p172 = scmp.ne.s32.totalorder %s164, %s167
    %p173 = scmp.eq.s32.totalorder %s22, 0
    %p174 = por %p172, %p173
    %p175 = scmp.ne.s32.totalorder %s164, %s167
    %p176 = scmp.eq.s32.totalorder %s27, 3
    %p177 = por %p175, %p176
    %p178 = scmp.ne.s32.totalorder %s167, %s168
    %p179 = scmp.eq.s32.totalorder %s27, 0
    %p180 = por %p178, %p179
    %p181 = scmp.ne.s32.totalorder %s167, %s168
    %p182 = scmp.eq.s32.totalorder %s28, 3
    %p183 = por %p181, %p182
    %p185 = scmp.ne.s32.totalorder %s168, %s184
    %p186 = scmp.eq.s32.totalorder %s28, 0
    %p187 = por %p185, %p186
    %s188 = ssub.s32 %s30, %s37
    %p189 = scmp.eq.s32.totalorder %s188, 0
    %s191 = sadd.s32 %s190, 1
    %s192 = scalar_select %p189, %s190, %s191
    %p195 = pneg %p189
    %p196 = scmp.eq.s32.totalorder %s22, 3
    %p197 = por %p195, %p196
    %p198 = scmp.ne.s32.totalorder %s190, %s193
    %p199 = scmp.eq.s32.totalorder %s22, 0
    %p200 = por %p198, %p199
    %p201 = scmp.ne.s32.totalorder %s190, %s193
    %p202 = scmp.eq.s32.totalorder %s27, 3
    %p203 = por %p201, %p202
    %p204 = scmp.ne.s32.totalorder %s193, %s194
    %p205 = scmp.eq.s32.totalorder %s27, 0
    %p206 = por %p204, %p205
    %p207 = scmp.ne.s32.totalorder %s193, %s194
    %p208 = scmp.eq.s32.totalorder %s28, 3
    %p209 = por %p207, %p208
    %p211 = scmp.ne.s32.totalorder %s194, %s210
    %p212 = scmp.eq.s32.totalorder %s28, 0
    %p213 = por %p211, %p212
    %s214 = ssub.s32 %s30, %s37
    %p215 = scmp.eq.s32.totalorder %s214, 0
    %s217 = sadd.s32 %s216, 1
    %s218 = scalar_select %p215, %s216, %s217
    %p221 = pneg %p215
    %p222 = scmp.eq.s32.totalorder %s22, 3
    %p223 = por %p221, %p222
    %p224 = scmp.ne.s32.totalorder %s216, %s219
    %p225 = scmp.eq.s32.totalorder %s22, 0
    %p226 = por %p224, %p225
    %p227 = scmp.ne.s32.totalorder %s216, %s219
    %p228 = scmp.eq.s32.totalorder %s27, 3
    %p229 = por %p227, %p228
    %p230 = scmp.ne.s32.totalorder %s219, %s220
    %p231 = scmp.eq.s32.totalorder %s27, 0
    %p232 = por %p230, %p231
    %p233 = scmp.ne.s32.totalorder %s219, %s220
    %p234 = scmp.eq.s32.totalorder %s28, 3
    %p235 = por %p233, %p234
    %p237 = scmp.ne.s32.totalorder %s220, %s236
    %p238 = scmp.eq.s32.totalorder %s28, 0
    %p239 = por %p237, %p238
    %s240 = ssub.s32 %s30, %s37
    %p241 = scmp.eq.s32.totalorder %s240, 0
    %s243 = sadd.s32 %s242, 1
    %s244 = scalar_select %p241, %s242, %s243
    %p247 = pneg %p241
    %p248 = scmp.eq.s32.totalorder %s22, 3
    %p249 = por %p247, %p248
    %p250 = scmp.ne.s32.totalorder %s242, %s245
    %p251 = scmp.eq.s32.totalorder %s22, 0
    %p252 = por %p250, %p251
    %p253 = scmp.ne.s32.totalorder %s242, %s245
    %p254 = scmp.eq.s32.totalorder %s27, 3
    %p255 = por %p253, %p254
    %p256 = scmp.ne.s32.totalorder %s245, %s246
    %p257 = scmp.eq.s32.totalorder %s27, 0
    %p258 = por %p256, %p257
    %p259 = scmp.ne.s32.totalorder %s245, %s246
    %p260 = scmp.eq.s32.totalorder %s28, 3
    %p261 = por %p259, %p260
    %p263 = scmp.ne.s32.totalorder %s246, %s262
    %p264 = scmp.eq.s32.totalorder %s28, 0
    %p265 = por %p263, %p264
    %s266 = ssub.s32 %s30, %s37
    %p267 = scmp.eq.s32.totalorder %s266, 0
    %s269 = sadd.s32 %s268, 1
    %s270 = scalar_select %p267, %s268, %s269
    %p273 = pneg %p267
    %p274 = scmp.eq.s32.totalorder %s22, 3
    %p275 = por %p273, %p274
    %p276 = scmp.ne.s32.totalorder %s268, %s271
    %p277 = scmp.eq.s32.totalorder %s22, 0
    %p278 = por %p276, %p277
    %p279 = scmp.ne.s32.totalorder %s268, %s271
    %p280 = scmp.eq.s32.totalorder %s27, 3
    %p281 = por %p279, %p280
    %p282 = scmp.ne.s32.totalorder %s271, %s272
    %p283 = scmp.eq.s32.totalorder %s27, 0
    %p284 = por %p282, %p283
    %p285 = scmp.ne.s32.totalorder %s271, %s272
    %p286 = scmp.eq.s32.totalorder %s28, 3
    %p287 = por %p285, %p286
    %p289 = scmp.ne.s32.totalorder %s272, %s288
    %p290 = scmp.eq.s32.totalorder %s28, 0
    %p291 = por %p289, %p290
    %s292 = ssub.s32 %s30, %s37
    %p293 = scmp.eq.s32.totalorder %s292, 0
    %s295 = sadd.s32 %s294, 1
    %s296 = scalar_select %p293, %s294, %s295
    %p299 = pneg %p293
    %p300 = scmp.eq.s32.totalorder %s22, 3
    %p301 = por %p299, %p300
    %p302 = scmp.ne.s32.totalorder %s294, %s297
    %p303 = scmp.eq.s32.totalorder %s22, 0
    %p304 = por %p302, %p303
    %p305 = scmp.ne.s32.totalorder %s294, %s297
    %p306 = scmp.eq.s32.totalorder %s27, 3
    %p307 = por %p305, %p306
    %p308 = scmp.ne.s32.totalorder %s297, %s298
    %p309 = scmp.eq.s32.totalorder %s27, 0
    %p310 = por %p308, %p309
    %p311 = scmp.ne.s32.totalorder %s297, %s298
    %p312 = scmp.eq.s32.totalorder %s28, 3
    %p313 = por %p311, %p312
    %p315 = scmp.ne.s32.totalorder %s298, %s314
    %p316 = scmp.eq.s32.totalorder %s28, 0
    %p317 = por %p315, %p316
    %s318 = ssub.s32 %s30, %s37
    %p319 = scmp.eq.s32.totalorder %s318, 0
    %s321 = sadd.s32 %s320, 1
    %s322 = scalar_select %p319, %s320, %s321
    %p325 = pneg %p319
    %p326 = scmp.eq.s32.totalorder %s22, 3
    %p327 = por %p325, %p326
    %p328 = scmp.ne.s32.totalorder %s320, %s323
    %p329 = scmp.eq.s32.totalorder %s22, 0
    %p330 = por %p328, %p329
    %p331 = scmp.ne.s32.totalorder %s320, %s323
    %p332 = scmp.eq.s32.totalorder %s27, 3
    %p333 = por %p331, %p332
    %p334 = scmp.ne.s32.totalorder %s323, %s324
    %p335 = scmp.eq.s32.totalorder %s27, 0
    %p336 = por %p334, %p335
    %p337 = scmp.ne.s32.totalorder %s323, %s324
    %p338 = scmp.eq.s32.totalorder %s28, 3
    %p339 = por %p337, %p338
    %p341 = scmp.ne.s32.totalorder %s324, %s340
    %p342 = scmp.eq.s32.totalorder %s28, 0
    %p343 = por %p341, %p342
    %s344 = ssub.s32 %s30, %s37
    %p345 = scmp.eq.s32.totalorder %s344, 0
    %s347 = sadd.s32 %s346, 1
    %s348 = scalar_select %p345, %s346, %s347
    %p351 = pneg %p345
    %p352 = scmp.eq.s32.totalorder %s22, 3
    %p353 = por %p351, %p352
    %p354 = scmp.ne.s32.totalorder %s346, %s349
    %p355 = scmp.eq.s32.totalorder %s22, 0
    %p356 = por %p354, %p355
    %p357 = scmp.ne.s32.totalorder %s346, %s349
    %p358 = scmp.eq.s32.totalorder %s27, 3
    %p359 = por %p357, %p358
    %p360 = scmp.ne.s32.totalorder %s349, %s350
    %p361 = scmp.eq.s32.totalorder %s27, 0
    %p362 = por %p360, %p361
    %p363 = scmp.ne.s32.totalorder %s349, %s350
    %p364 = scmp.eq.s32.totalorder %s28, 3
    %p365 = por %p363, %p364
    %p367 = scmp.ne.s32.totalorder %s350, %s366
    %p368 = scmp.eq.s32.totalorder %s28, 0
    %p369 = por %p367, %p368
    %s370 = ssub.s32 %s30, %s37
    %p371 = scmp.eq.s32.totalorder %s370, 0
    %s373 = sadd.s32 %s372, 1
    %s374 = scalar_select %p371, %s372, %s373
    %p377 = pneg %p371
    %p378 = scmp.eq.s32.totalorder %s22, 3
    %p379 = por %p377, %p378
    %p380 = scmp.ne.s32.totalorder %s372, %s375
    %p381 = scmp.eq.s32.totalorder %s22, 0
    %p382 = por %p380, %p381
    %p383 = scmp.ne.s32.totalorder %s372, %s375
    %p384 = scmp.eq.s32.totalorder %s27, 3
    %p385 = por %p383, %p384
    %p386 = scmp.ne.s32.totalorder %s375, %s376
    %p387 = scmp.eq.s32.totalorder %s27, 0
    %p388 = por %p386, %p387
    %p389 = scmp.ne.s32.totalorder %s375, %s376
    %p390 = scmp.eq.s32.totalorder %s28, 3
    %p391 = por %p389, %p390
    %p393 = scmp.ne.s32.totalorder %s376, %s392
    %p394 = scmp.eq.s32.totalorder %s28, 0
    %p395 = por %p393, %p394
    %s396 = ssub.s32 %s30, %s37
    %p397 = scmp.eq.s32.totalorder %s396, 0
    %s399 = sadd.s32 %s398, 1
    %s400 = scalar_select %p397, %s398, %s399
    %p403 = pneg %p397
    %p404 = scmp.eq.s32.totalorder %s22, 3
    %p405 = por %p403, %p404
    %p406 = scmp.ne.s32.totalorder %s398, %s401
    %p407 = scmp.eq.s32.totalorder %s22, 0
    %p408 = por %p406, %p407
    %p409 = scmp.ne.s32.totalorder %s398, %s401
    %p410 = scmp.eq.s32.totalorder %s27, 3
    %p411 = por %p409, %p410
    %p412 = scmp.ne.s32.totalorder %s401, %s402
    %p413 = scmp.eq.s32.totalorder %s27, 0
    %p414 = por %p412, %p413
    %p415 = scmp.ne.s32.totalorder %s401, %s402
    %p416 = scmp.eq.s32.totalorder %s28, 3
    %p417 = por %p415, %p416
    %p419 = scmp.ne.s32.totalorder %s402, %s418
    %p420 = scmp.eq.s32.totalorder %s28, 0
    %p421 = por %p419, %p420
    %s422 = ssub.s32 %s30, %s37
    %p423 = scmp.eq.s32.totalorder %s422, 0
    %s425 = sadd.s32 %s424, 1
    %s426 = scalar_select %p423, %s424, %s425
    %p429 = pneg %p423
    %p430 = scmp.eq.s32.totalorder %s22, 3
    %p431 = por %p429, %p430
    %p432 = scmp.ne.s32.totalorder %s424, %s427
    %p433 = scmp.eq.s32.totalorder %s22, 0
    %p434 = por %p432, %p433
    %p435 = scmp.ne.s32.totalorder %s424, %s427
    %p436 = scmp.eq.s32.totalorder %s27, 3
    %p437 = por %p435, %p436
    %p438 = scmp.ne.s32.totalorder %s427, %s428
    %p439 = scmp.eq.s32.totalorder %s27, 0
    %p440 = por %p438, %p439
    %p441 = scmp.ne.s32.totalorder %s427, %s428
    %p442 = scmp.eq.s32.totalorder %s28, 3
    %p443 = por %p441, %p442
    %p445 = scmp.ne.s32.totalorder %s428, %s444
    %p446 = scmp.eq.s32.totalorder %s28, 0
    %p447 = por %p445, %p446
    %s448 = ssub.s32 %s29, %s41
    %p449 = scmp.eq.s32.totalorder %s448, 0
    %s451 = sadd.s32 %s450, 1
    %s452 = scalar_select %p449, %s450, %s451
    %p455 = pneg %p449
    %p456 = scmp.eq.s32.totalorder %s22, 3
    %p457 = por %p455, %p456
    %p458 = scmp.ne.s32.totalorder %s450, %s453
    %p459 = scmp.eq.s32.totalorder %s22, 0
    %p460 = por %p458, %p459
    %p461 = scmp.ne.s32.totalorder %s450, %s453
    %p462 = scmp.eq.s32.totalorder %s27, 3
    %p463 = por %p461, %p462
    %p464 = scmp.ne.s32.totalorder %s453, %s454
    %p465 = scmp.eq.s32.totalorder %s27, 0
    %p466 = por %p464, %p465
    %p467 = scmp.ne.s32.totalorder %s453, %s454
    %p468 = scmp.eq.s32.totalorder %s28, 3
    %p469 = por %p467, %p468
    %p471 = scmp.ne.s32.totalorder %s454, %s470
    %p472 = scmp.eq.s32.totalorder %s28, 0
    %p473 = por %p471, %p472
    %p474 = scmp.le.s32.totalorder 1, %s22
    %p475 = scmp.lt.s32.totalorder %s22, 5
    %p476 = pnand %p474, %p475
    %p477 = pneg %p476
    // Predicated region
    $region9: #{span_marker_forward.2} parent=5 // pred_check
      _
    $region10: #{span_marker_forward.2} parent=5 // pred_check_branch
      %479 = sbr.rel (%p476) target = $region12
    $region11: #{span_marker_forward.2} parent=5 // pred_region
      %s480 = ssub.s32 %s22, 1
      // Predicated region
      $region13: #{span_marker_forward.2} parent=11 // pred_check
        %p481 = pneg %p81
      $region14: #{span_marker_forward.2} parent=11 // pred_check_branch
        %483 = sbr.rel (%p481) target = $region16
      $region15: #{span_marker_forward.2} parent=11 // pred_region
        _
      $region16: #{span_marker_forward.2} parent=11 // pred_fallthru
        _
      // Predicated region
      $region17: #{span_marker_forward.2} parent=11 // pred_check
        %p484 = pneg %p102
      $region18: #{span_marker_forward.2} parent=11 // pred_check_branch
        %486 = sbr.rel (%p484) target = $region20
      $region19: #{span_marker_forward.2} parent=11 // pred_region
        _
      $region20: #{span_marker_forward.2} parent=11 // pred_fallthru
        _
    $region12: #{span_marker_forward.2} parent=5 // pred_fallthru
      _
    %p487 = scmp.lt.s32.totalorder %s22, 4
    // Predicated region
    $region21: #{span_marker_forward.2} parent=5 // pred_check
      %p488 = pneg %p487
    $region22: #{span_marker_forward.2} parent=5 // pred_check_branch
      %490 = sbr.rel (%p488) target = $region24
    $region23: #{span_marker_forward.2} parent=5 // pred_region
      // Predicated region
      $region25: #{span_marker_forward.2} parent=23 // pred_check
        %p491 = pneg %p54
      $region26: #{span_marker_forward.2} parent=23 // pred_check_branch
        %493 = sbr.rel (%p491) target = $region28
      $region27: #{span_marker_forward.2} parent=23 // pred_region
        %s494 = smul.u32 2, %s29
        %p495 = scmp.lt.s32.totalorder %s494, 3
        %s496 = scalar_select %p495, %s494, 3
        %s497 = smul.addr %s496, 4
        %s498 = scalar_lea.vmem %s0, %s497
        %s499 = smul.u32 2, %s29
      $region28: #{span_marker_forward.2} parent=23 // pred_fallthru
        _
      // Predicated region
      $region29: #{span_marker_forward.2} parent=23 // pred_check
        %p500 = pneg %p122
      $region30: #{span_marker_forward.2} parent=23 // pred_check_branch
        %502 = sbr.rel (%p500) target = $region32
      $region31: #{span_marker_forward.2} parent=23 // pred_region
        %p503 = scmp.lt.s32.totalorder %s29, 1
        %s504 = scalar_select %p503, %s29, 1
        %s505 = smul.addr %s504, 2
        %s506 = smul.addr %s505, 4
        %s507 = scalar_lea.vmem %s3, %s506
      $region32: #{span_marker_forward.2} parent=23 // pred_fallthru
        _
      // Predicated region
      $region33: #{span_marker_forward.2} parent=23 // pred_check
        %p508 = pneg %p148
      $region34: #{span_marker_forward.2} parent=23 // pred_check_branch
        %510 = sbr.rel (%p508) target = $region36
      $region35: #{span_marker_forward.2} parent=23 // pred_region
        %p511 = scmp.lt.s32.totalorder %s30, 1
        %s512 = scalar_select %p511, %s30, 1
        %s513 = smul.addr %s512, 4
        %s514 = smul.addr %s513, 4
        %s515 = scalar_lea.vmem %s4, %s514
      $region36: #{span_marker_forward.2} parent=23 // pred_fallthru
        _
      // Predicated region
      $region37: #{span_marker_forward.2} parent=23 // pred_check
        %p516 = pneg %p174
      $region38: #{span_marker_forward.2} parent=23 // pred_check_branch
        %518 = sbr.rel (%p516) target = $region40
      $region39: #{span_marker_forward.2} parent=23 // pred_region
        %p519 = scmp.lt.s32.totalorder %s30, 1
        %s520 = scalar_select %p519, %s30, 1
        %s521 = scalar_lea.vmem %s5, %s520
      $region40: #{span_marker_forward.2} parent=23 // pred_fallthru
        _
      // Predicated region
      $region41: #{span_marker_forward.2} parent=23 // pred_check
        %p522 = pneg %p200
      $region42: #{span_marker_forward.2} parent=23 // pred_check_branch
        %524 = sbr.rel (%p522) target = $region44
      $region43: #{span_marker_forward.2} parent=23 // pred_region
        %p525 = scmp.lt.s32.totalorder %s30, 1
        %s526 = scalar_select %p525, %s30, 1
        %s527 = smul.addr %s526, 4
        %s528 = smul.addr %s527, 4
        %s529 = scalar_lea.vmem %s6, %s528
      $region44: #{span_marker_forward.2} parent=23 // pred_fallthru
        _
      // Predicated region
      $region45: #{span_marker_forward.2} parent=23 // pred_check
        %p530 = pneg %p226
      $region46: #{span_marker_forward.2} parent=23 // pred_check_branch
        %532 = sbr.rel (%p530) target = $region48
      $region47: #{span_marker_forward.2} parent=23 // pred_region
        %p533 = scmp.lt.s32.totalorder %s30, 1
        %s534 = scalar_select %p533, %s30, 1
        %s535 = scalar_lea.vmem %s7, %s534
      $region48: #{span_marker_forward.2} parent=23 // pred_fallthru
        _
      // Predicated region
      $region49: #{span_marker_forward.2} parent=23 // pred_check
        %p536 = pneg %p252
      $region50: #{span_marker_forward.2} parent=23 // pred_check_branch
        %538 = sbr.rel (%p536) target = $region52
      $region51: #{span_marker_forward.2} parent=23 // pred_region
        %p539 = scmp.lt.s32.totalorder %s30, 1
        %s540 = scalar_select %p539, %s30, 1
        %s541 = scalar_lea.vmem %s8, %s540
      $region52: #{span_marker_forward.2} parent=23 // pred_fallthru
        _
      // Predicated region
      $region53: #{span_marker_forward.2} parent=23 // pred_check
        %p542 = pneg %p278
      $region54: #{span_marker_forward.2} parent=23 // pred_check_branch
        %544 = sbr.rel (%p542) target = $region56
      $region55: #{span_marker_forward.2} parent=23 // pred_region
        %p545 = scmp.lt.s32.totalorder %s30, 1
        %s546 = scalar_select %p545, %s30, 1
        %s547 = scalar_lea.vmem %s9, %s546
      $region56: #{span_marker_forward.2} parent=23 // pred_fallthru
        _
      // Predicated region
      $region57: #{span_marker_forward.2} parent=23 // pred_check
        %p548 = pneg %p304
      $region58: #{span_marker_forward.2} parent=23 // pred_check_branch
        %550 = sbr.rel (%p548) target = $region60
      $region59: #{span_marker_forward.2} parent=23 // pred_region
        %p551 = scmp.lt.s32.totalorder %s30, 1
        %s552 = scalar_select %p551, %s30, 1
        %s553 = smul.addr %s552, 4
        %s554 = smul.addr %s553, 4
        %s555 = scalar_lea.vmem %s10, %s554
      $region60: #{span_marker_forward.2} parent=23 // pred_fallthru
        _
      // Predicated region
      $region61: #{span_marker_forward.2} parent=23 // pred_check
        %p556 = pneg %p330
      $region62: #{span_marker_forward.2} parent=23 // pred_check_branch
        %558 = sbr.rel (%p556) target = $region64
      $region63: #{span_marker_forward.2} parent=23 // pred_region
        %p559 = scmp.lt.s32.totalorder %s30, 1
        %s560 = scalar_select %p559, %s30, 1
        %s561 = scalar_lea.vmem %s11, %s560
      $region64: #{span_marker_forward.2} parent=23 // pred_fallthru
        _
      // Predicated region
      $region65: #{span_marker_forward.2} parent=23 // pred_check
        %p562 = pneg %p356
      $region66: #{span_marker_forward.2} parent=23 // pred_check_branch
        %564 = sbr.rel (%p562) target = $region68
      $region67: #{span_marker_forward.2} parent=23 // pred_region
        %p565 = scmp.lt.s32.totalorder %s30, 1
        %s566 = scalar_select %p565, %s30, 1
        %s567 = smul.addr %s566, 8
        %s568 = smul.addr %s567, 4
        %s569 = scalar_lea.vmem %s12, %s568
      $region68: #{span_marker_forward.2} parent=23 // pred_fallthru
        _
      // Predicated region
      $region69: #{span_marker_forward.2} parent=23 // pred_check
        %p570 = pneg %p382
      $region70: #{span_marker_forward.2} parent=23 // pred_check_branch
        %572 = sbr.rel (%p570) target = $region72
      $region71: #{span_marker_forward.2} parent=23 // pred_region
        %p573 = scmp.lt.s32.totalorder %s30, 1
        %s574 = scalar_select %p573, %s30, 1
        %s575 = scalar_lea.vmem %s13, %s574
      $region72: #{span_marker_forward.2} parent=23 // pred_fallthru
        _
      // Predicated region
      $region73: #{span_marker_forward.2} parent=23 // pred_check
        %p576 = pneg %p408
      $region74: #{span_marker_forward.2} parent=23 // pred_check_branch
        %578 = sbr.rel (%p576) target = $region76
      $region75: #{span_marker_forward.2} parent=23 // pred_region
        %p579 = scmp.lt.s32.totalorder %s30, 1
        %s580 = scalar_select %p579, %s30, 1
        %s581 = scalar_lea.vmem %s14, %s580
      $region76: #{span_marker_forward.2} parent=23 // pred_fallthru
        _
      // Predicated region
      $region77: #{span_marker_forward.2} parent=23 // pred_check
        %p582 = pneg %p434
      $region78: #{span_marker_forward.2} parent=23 // pred_check_branch
        %584 = sbr.rel (%p582) target = $region80
      $region79: #{span_marker_forward.2} parent=23 // pred_region
        %p585 = scmp.lt.s32.totalorder %s30, 1
        %s586 = scalar_select %p585, %s30, 1
        %s587 = scalar_lea.vmem %s15, %s586
      $region80: #{span_marker_forward.2} parent=23 // pred_fallthru
        _
    $region24: #{span_marker_forward.2} parent=5 // pred_fallthru
      _
    %p588 = scmp.le.s32.totalorder 1, %s22
    %p589 = scmp.lt.s32.totalorder %s22, 5
    %p590 = pnand %p588, %p589
    %p591 = pneg %p590
    // Predicated region
    $region81: #{span_marker_forward.2} parent=5 // pred_check
      _
    $region82: #{span_marker_forward.2} parent=5 // pred_check_branch
      %593 = sbr.rel (%p590) target = $region84
    $region83: #{span_marker_forward.2} parent=5 // pred_region
      %s594 = ssub.s32 %s22, 1
      %s595 = smul.u32 2, %s31
      %p596 = scmp.lt.s32.totalorder %s595, 3
      %s597 = scalar_select %p596, %s595, 3
      %s598 = smul.addr %s597, 4
      %s599 = scalar_lea.vmem %s0, %s598
      %p600 = pneg %p60
      %p601 = pneg %p57
      %p602 = pneg %p81
      %p603 = pneg %p78
      %p604 = pneg %p102
      %p605 = pneg %p99
      %p606 = scmp.lt.s32.totalorder %s31, 1
      %s607 = scalar_select %p606, %s31, 1
      %s608 = smul.addr %s607, 2
      %s609 = smul.addr %s608, 4
      %s610 = scalar_lea.vmem %s3, %s609
      %p611 = pneg %p128
      %p612 = pneg %p125
      %p613 = scmp.lt.s32.totalorder %s32, 1
      %s614 = scalar_select %p613, %s32, 1
      %s615 = smul.addr %s614, 4
      %s616 = smul.addr %s615, 4
      %s617 = scalar_lea.vmem %s4, %s616
      %p618 = pneg %p154
      %p619 = pneg %p151
      %p620 = scmp.lt.s32.totalorder %s32, 1
      %s621 = scalar_select %p620, %s32, 1
      %s622 = scalar_lea.vmem %s5, %s621
      %p623 = pneg %p180
      %p624 = pneg %p177
      %p625 = scmp.lt.s32.totalorder %s32, 1
      %s626 = scalar_select %p625, %s32, 1
      %s627 = smul.addr %s626, 4
      %s628 = smul.addr %s627, 4
      %s629 = scalar_lea.vmem %s6, %s628
      %p630 = pneg %p206
      %p631 = pneg %p203
      %p632 = scmp.lt.s32.totalorder %s32, 1
      %s633 = scalar_select %p632, %s32, 1
      %s634 = scalar_lea.vmem %s7, %s633
      %p635 = pneg %p232
      %p636 = pneg %p229
      %p637 = scmp.lt.s32.totalorder %s32, 1
      %s638 = scalar_select %p637, %s32, 1
      %s639 = scalar_lea.vmem %s8, %s638
      %p640 = pneg %p258
      %p641 = pneg %p255
      %p642 = scmp.lt.s32.totalorder %s32, 1
      %s643 = scalar_select %p642, %s32, 1
      %s644 = scalar_lea.vmem %s9, %s643
      %p645 = pneg %p284
      %p646 = pneg %p281
      %p647 = scmp.lt.s32.totalorder %s32, 1
      %s648 = scalar_select %p647, %s32, 1
      %s649 = smul.addr %s648, 4
      %s650 = smul.addr %s649, 4
      %s651 = scalar_lea.vmem %s10, %s650
      %p652 = pneg %p310
      %p653 = pneg %p307
      %p654 = scmp.lt.s32.totalorder %s32, 1
      %s655 = scalar_select %p654, %s32, 1
      %s656 = scalar_lea.vmem %s11, %s655
      %p657 = pneg %p336
      %p658 = pneg %p333
      %p659 = scmp.lt.s32.totalorder %s32, 1
      %s660 = scalar_select %p659, %s32, 1
      %s661 = smul.addr %s660, 8
      %s662 = smul.addr %s661, 4
      %s663 = scalar_lea.vmem %s12, %s662
      %p664 = pneg %p362
      %p665 = pneg %p359
      %p666 = scmp.lt.s32.totalorder %s32, 1
      %s667 = scalar_select %p666, %s32, 1
      %s668 = scalar_lea.vmem %s13, %s667
      %p669 = pneg %p388
      %p670 = pneg %p385
      %p671 = scmp.lt.s32.totalorder %s32, 1
      %s672 = scalar_select %p671, %s32, 1
      %s673 = scalar_lea.vmem %s14, %s672
      %p674 = pneg %p414
      %p675 = pneg %p411
      %p676 = scmp.lt.s32.totalorder %s32, 1
      %s677 = scalar_select %p676, %s32, 1
      %s678 = scalar_lea.vmem %s15, %s677
      %p679 = pneg %p440
      %p680 = pneg %p437
      %p681 = pneg %p466
      %p682 = pneg %p463
      %s683 = smul.u32 2, %s31
      %p684 = scmp.lt.s32.totalorder %s683, 3
      %s685 = scalar_select %p684, %s683, 3
      %s686 = smul.addr %s685, 4
      %s687 = scalar_lea.vmem %s16, %s686
      %s688 = smul.u32 2, %s31
      %p689 = scmp.lt.s32.totalorder %s688, 3
      %s690 = scalar_select %p689, %s688, 3
      %s691 = smul.addr %s690, 4
      %s692 = scalar_lea.vmem %s0, %s691
      %s693 = smul.u32 2, %s31
      %p694 = scmp.lt.s32.totalorder %s31, 1
      %s695 = scalar_select %p694, %s31, 1
      %s696 = smul.addr %s695, 2
      %s697 = smul.addr %s696, 4
      %s698 = scalar_lea.vmem %s3, %s697
      %p699 = scmp.lt.s32.totalorder %s32, 1
      %s700 = scalar_select %p699, %s32, 1
      %s701 = smul.addr %s700, 4
      %s702 = smul.addr %s701, 4
      %s703 = scalar_lea.vmem %s4, %s702
      %p704 = scmp.lt.s32.totalorder %s32, 1
      %s705 = scalar_select %p704, %s32, 1
      %s706 = scalar_lea.vmem %s5, %s705
      %p707 = scmp.lt.s32.totalorder %s32, 1
      %s708 = scalar_select %p707, %s32, 1
      %s709 = smul.addr %s708, 4
      %s710 = smul.addr %s709, 4
      %s711 = scalar_lea.vmem %s6, %s710
      %p712 = scmp.lt.s32.totalorder %s32, 1
      %s713 = scalar_select %p712, %s32, 1
      %s714 = scalar_lea.vmem %s7, %s713
      %p715 = scmp.lt.s32.totalorder %s32, 1
      %s716 = scalar_select %p715, %s32, 1
      %s717 = scalar_lea.vmem %s8, %s716
      %p718 = scmp.lt.s32.totalorder %s32, 1
      %s719 = scalar_select %p718, %s32, 1
      %s720 = scalar_lea.vmem %s9, %s719
      %p721 = scmp.lt.s32.totalorder %s32, 1
      %s722 = scalar_select %p721, %s32, 1
      %s723 = smul.addr %s722, 4
      %s724 = smul.addr %s723, 4
      %s725 = scalar_lea.vmem %s10, %s724
      %p726 = scmp.lt.s32.totalorder %s32, 1
      %s727 = scalar_select %p726, %s32, 1
      %s728 = scalar_lea.vmem %s11, %s727
      %p729 = scmp.lt.s32.totalorder %s32, 1
      %s730 = scalar_select %p729, %s32, 1
      %s731 = smul.addr %s730, 8
      %s732 = smul.addr %s731, 4
      %s733 = scalar_lea.vmem %s12, %s732
      %p734 = scmp.lt.s32.totalorder %s32, 1
      %s735 = scalar_select %p734, %s32, 1
      %s736 = scalar_lea.vmem %s13, %s735
      %p737 = scmp.lt.s32.totalorder %s32, 1
      %s738 = scalar_select %p737, %s32, 1
      %s739 = scalar_lea.vmem %s14, %s738
      %p740 = scmp.lt.s32.totalorder %s32, 1
      %s741 = scalar_select %p740, %s32, 1
      %s742 = scalar_lea.vmem %s15, %s741
      %s743 = smul.u32 2, %s31
      %p744 = scmp.lt.s32.totalorder %s743, 3
      %s745 = scalar_select %p744, %s743, 3
      %s746 = smul.addr %s745, 4
      %s747 = scalar_lea.vmem %s16, %s746
      %s748 = smul.u32 2, %s31
      %p750 = scmp.eq.s32.totalorder %s32, 0
      // Predicated region
      $region85: #{span_marker_forward.2} parent=83 // pred_check
        %p751 = pneg %p750
      $region86: #{span_marker_forward.2} parent=83 // pred_check_branch
        %753 = sbr.rel (%p751) target = $region88
      $region87: #{span_marker_forward.2} parent=83 // pred_region
        %v754 = vld [vmem:[%s692] sm:$0xf]
        %v755 = vld [vmem:[%s692 + $0x4] sm:$0xf]
        %v756 = vunpack.c.l.bf16 %v754
        %v757 = vunpack.c.l.bf16 %v755
        %v758 = vld [vmem:[%s1] sm:$0x1]
        %v759 = vld [vmem:[%s2] sm:$0x1]
        %vm760 = vcmask 261120
        %v761 = vsel %vm760, %v756, 0.0
        %762 = vadd.xlane.f32.xlu0 %v761
        %v763 = vpop.xlane.xlu0 %762
        %v764 = vsel %vm760, %v757, 0.0
        %765 = vadd.xlane.f32.xlu0 %v764
        %v766 = vpop.xlane.xlu0 %765
        %v767 = vrcp.pop 32.0
        %v768 = vmul.f32 %v763, %v767
        %v769 = vmul.f32 %v766, %v767
        %v770 = vsub.f32 %v756, %v768
        %v771 = vsub.f32 %v757, %v769
        %v772 = vmul.f32 %v770, %v770
        %v773 = vmul.f32 %v771, %v771
        %v774 = vsel %vm760, %v772, 0.0
        %775 = vadd.xlane.f32.xlu0 %v774
        %v776 = vpop.xlane.xlu0 %775
        %v777 = vsel %vm760, %v773, 0.0
        %778 = vadd.xlane.f32.xlu0 %v777
        %v779 = vpop.xlane.xlu0 %778
        %v780 = vmul.f32 %v776, %v767
        %v781 = vmul.f32 %v779, %v767
        %v782 = vadd.f32 %v780, 1e-12
        %v783 = vadd.f32 %v781, 1e-12
        %v784 = vrsqrt.pop %v782
        %v785 = vrsqrt.pop %v783
        %v786 = vmul.f32 %v770, %v784
        %v787 = vmul.f32 %v771, %v785
        %v789 = vlaneseq
        %v790 = vshrl.u32 %v789, 7
        %v791 = vsub.s32 0, %v790
        %v792 = vrot.slane %v758, %v791
        %v794 = vmul.f32 %v786, %v792
        %v795 = vmul.f32 %v787, %v792
        %v797 = vlaneseq
        %v798 = vshrl.u32 %v797, 7
        %v799 = vsub.s32 0, %v798
        %v800 = vrot.slane %v759, %v799
        %v802 = vadd.f32 %v794, %v800
        %v803 = vadd.f32 %v795, %v800
        %v804 = vpack.c.bf16 %v803, %v802
        %v806 = vunpack.c.l.b16 %v804
        %v807 = vunpack.c.h.b16 %v804
        %v808 = vpack.c.b16 %v806, %v806
        %v809 = vpack.c.b16 %v807, %v807
        %vm812 = vcmask 257024
        %813 = vst.msk [vmem:[%s747] sm:$0xf] %vm812, %v808
        %814 = vst.msk [vmem:[%s747 + $0x4] sm:$0xf] %vm812, %v809
      $region88: #{span_marker_forward.2} parent=83 // pred_fallthru
        _
      %v815 = vld [vmem:[%s747] sm:$0xf]
      %v816 = vld [vmem:[%s747 + $0x4] sm:$0xf]
      %v817 = vunpack.c.l.bf16 %v815
      %v818 = vunpack.c.l.bf16 %v816
      %v819 = vld [vmem:[%s703] sm:$0xf]
      %v820 = vld [vmem:[%s703 + $0x4] sm:$0xf]
      %v821 = vld [vmem:[%s703 + $0x8] sm:$0xf]
      %v822 = vld [vmem:[%s703 + $0xc] sm:$0xf]
      %v823 = vld [vmem:[%s706] sm:$0x1]
      %v825 = vlaneseq
      %v826 = vshrl.u32 %v825, 7
      %v827 = vsub.s32 0, %v826
      %v828 = vrot.slane %v823, %v827
      %v832 = vunpack.c.l.b16 %v815
      %v833 = vunpack.c.l.b16 %v816
      %v834 = vpack.c.b16 %v833, %v832
      %v839 = vunpack.c.l.b16 %v819
      %v840 = vunpack.c.l.b16 %v820
      %v841 = vunpack.c.l.b16 %v821
      %v842 = vunpack.c.l.b16 %v822
      %v843 = vpack.c.b16 %v840, %v839
      %v844 = vpack.c.b16 %v842, %v841
      %vm847 = vcmask 261120
      %v849 = vsel %vm847, %v834, 0
      %851 = vmatprep.subr.bf16.mxu0 0
      %852 = vmatpush1.bf16.msra.mxu0 0
      %853 = vmatprep.subr.bf16.mxu0 0
      %854 = vmatpush1.bf16.msra.mxu0 0
      %855 = vmatprep.subr.bf16.mxu0 0
      %856 = vmatpush1.bf16.msra.mxu0 0
      %857 = vmatprep.subr.bf16.mxu0 0
      %858 = vmatpush1.bf16.msra.mxu0 0
      %859 = vmatprep.subr.bf16.mxu0 0
      %860 = vmatpush1.bf16.msra.mxu0 0
      %861 = vmatprep.subr.bf16.mxu0 0
      %862 = vmatpush1.bf16.msra.mxu0 0
      %863 = vmatprep.subr.bf16.mxu0 0
      %864 = vmatpush1.bf16.msra.mxu0 %v844
      %865 = vmatprep.subr.bf16.mxu0 0
      %866 = vmatpush1.bf16.msra.mxu0 %v843
      %867 = vmatprep.subr.bf16.mxu0 0
      %868 = vmatpush2.bf16.msra.mxu0 0
      %869 = vmatprep.subr.bf16.mxu0 0
      %870 = vmatpush2.bf16.msra.mxu0 0
      %871 = vmatprep.subr.bf16.mxu0 0
      %872 = vmatpush2.bf16.msra.mxu0 0
      %873 = vmatprep.subr.bf16.mxu0 0
      %874 = vmatpush2.bf16.msra.mxu0 0
      %875 = vmatprep.subr.bf16.mxu0 0
      %876 = vmatpush2.bf16.msra.mxu0 0
      %877 = vmatprep.subr.bf16.mxu0 0
      %878 = vmatpush2.bf16.msra.mxu0 0
      %879 = vmatprep.subr.bf16.mxu0 0
      %880 = vmatpush2.bf16.msra.mxu0 0
      %881 = vmatprep.subr.bf16.mxu0 0
      %882 = vmatpush2.bf16.msra.mxu0 0
      %883 = vmatprep.mubr.bf16.mxu0 0
      %884 = vmatmul.mubr.bf16.gmra.mxu0 %v849
      %v885 = vpop.f32.mrf.mxu0
      %v886 = vadd.f32 %v828, %v885
      %v887 = vpop.f32.mrf.mxu0
      %v888 = vpop.f32.mrf.mxu0
      %v889 = vadd.f32 %v828, %v888
      %v890 = vpop.f32.mrf.mxu0
      %891 = vdwg.mxu0
      %v892 = vpack.c.bf16 %v889, %v886
      %v893 = vld [vmem:[%s698] sm:$0xf]
      %v894 = vld [vmem:[%s698 + $0x4] sm:$0xf]
      %v895 = vunpack.c.l.bf16 %v893
      %v896 = vunpack.c.l.bf16 %v894
      %898 = vrot.lane.b32.xlu0 %v892, 96
      %v899 = vpop.permute.xlu0 %898
      %vm900 = vcmask 130048
      %v902 = vsel %vm900, %v892, 0
      %v905 = vsel %vm900, %v899, 0
      %907 = vmatprep.subr.bf16.mxu0 0
      %908 = vmatpush1.bf16.xpose.msra.mxu0 0
      %909 = vmatprep.subr.bf16.mxu0 0
      %910 = vmatpush1.bf16.xpose.msra.mxu0 0
      %911 = vmatprep.subr.bf16.mxu0 0
      %912 = vmatpush1.bf16.xpose.msra.mxu0 0
      %913 = vmatprep.subr.bf16.mxu0 0
      %914 = vmatpush1.bf16.xpose.msra.mxu0 0
      %915 = vmatprep.subr.bf16.mxu0 0
      %916 = vmatpush1.bf16.xpose.msra.mxu0 0
      %917 = vmatprep.subr.bf16.mxu0 0
      %918 = vmatpush1.bf16.xpose.msra.mxu0 0
      %919 = vmatprep.subr.bf16.mxu0 0
      %920 = vmatpush1.bf16.xpose.msra.mxu0 0
      %921 = vmatprep.subr.bf16.mxu0 0
      %922 = vmatpush1.bf16.xpose.msra.mxu0 %v905
      %923 = vmatprep.subr.bf16.mxu0 0
      %924 = vmatpush2.bf16.xpose.msra.mxu0 0
      %925 = vmatprep.subr.bf16.mxu0 0
      %926 = vmatpush2.bf16.xpose.msra.mxu0 0
      %927 = vmatprep.subr.bf16.mxu0 0
      %928 = vmatpush2.bf16.xpose.msra.mxu0 0
      %929 = vmatprep.subr.bf16.mxu0 0
      %930 = vmatpush2.bf16.xpose.msra.mxu0 0
      %931 = vmatprep.subr.bf16.mxu0 0
      %932 = vmatpush2.bf16.xpose.msra.mxu0 0
      %933 = vmatprep.subr.bf16.mxu0 0
      %934 = vmatpush2.bf16.xpose.msra.mxu0 0
      %935 = vmatprep.subr.bf16.mxu0 0
      %936 = vmatpush2.bf16.xpose.msra.mxu0 0
      %937 = vmatprep.subr.bf16.mxu0 0
      %938 = vmatpush2.bf16.xpose.msra.mxu0 0
      %939 = vmatprep.mubr.bf16.mxu0 0
      %940 = vmatmul.mubr.bf16.gmra.mxu0 %v902
      %v941 = vpop.f32.mrf.mxu0
      %v942 = vadd.f32 0.0, %v941
      %v943 = vpop.f32.mrf.mxu0
      %v944 = vpop.f32.mrf.mxu0
      %v945 = vadd.f32 0.0, %v944
      %v946 = vpop.f32.mrf.mxu0
      %947 = vdwg.mxu0
      %v948 = vmul.f32 %v942, 0.25
      %v949 = vmul.f32 %v945, 0.25
      %v950 = vadd.f32 %v948, %v895
      %v951 = vadd.f32 %v949, %v896
      %v952 = vsel %vm900, %v950, -inf
      %953 = vmax.xlane.f32.xlu0 %v952
      %v954 = vpop.xlane.xlu0 %953
      %v955 = vsel %vm900, %v951, -inf
      %956 = vmax.xlane.f32.xlu0 %v955
      %v957 = vpop.xlane.xlu0 %956
      %v958 = vsub.f32 %v950, %v954
      %v959 = vsub.f32 %v951, %v957
      %v960 = vmul.f32 %v958, 1.442695
      %v961 = vpow.pop %v960
      %v962 = vmul.f32 %v959, 1.442695
      %v963 = vpow.pop %v962
      %v964 = vsel %vm900, %v961, 0.0
      %965 = vadd.xlane.f32.xlu0 %v964
      %v966 = vpop.xlane.xlu0 %965
      %v967 = vsel %vm900, %v963, 0.0
      %968 = vadd.xlane.f32.xlu0 %v967
      %v969 = vpop.xlane.xlu0 %968
      %v970 = vrcp.pop %v966
      %v971 = vrcp.pop %v969
      %v972 = vmul.f32 %v961, %v970
      %v973 = vmul.f32 %v963, %v971
      %v974 = vpack.c.bf16 %v973, %v972
      %975 = vrot.lane.b32.xlu0 %v892, 64
      %v976 = vpop.permute.xlu0 %975
      %v979 = vsel %vm900, %v974, 0
      %981 = vmatprep.subr.bf16.mxu0 0
      %982 = vmatpush1.bf16.msra.mxu0 0
      %983 = vmatprep.subr.bf16.mxu0 0
      %984 = vmatpush1.bf16.msra.mxu0 0
      %985 = vmatprep.subr.bf16.mxu0 0
      %986 = vmatpush1.bf16.msra.mxu0 0
      %987 = vmatprep.subr.bf16.mxu0 0
      %988 = vmatpush1.bf16.msra.mxu0 0
      %989 = vmatprep.subr.bf16.mxu0 0
      %990 = vmatpush1.bf16.msra.mxu0 0
      %991 = vmatprep.subr.bf16.mxu0 0
      %992 = vmatpush1.bf16.msra.mxu0 0
      %993 = vmatprep.subr.bf16.mxu0 0
      %994 = vmatpush1.bf16.msra.mxu0 0
      %995 = vmatprep.subr.bf16.mxu0 0
      %996 = vmatpush1.bf16.msra.mxu0 %v976
      %997 = vmatprep.subr.bf16.mxu0 0
      %998 = vmatpush2.bf16.msra.mxu0 0
      %999 = vmatprep.subr.bf16.mxu0 0
      %1000 = vmatpush2.bf16.msra.mxu0 0
      %1001 = vmatprep.subr.bf16.mxu0 0
      %1002 = vmatpush2.bf16.msra.mxu0 0
      %1003 = vmatprep.subr.bf16.mxu0 0
      %1004 = vmatpush2.bf16.msra.mxu0 0
      %1005 = vmatprep.subr.bf16.mxu0 0
      %1006 = vmatpush2.bf16.msra.mxu0 0
      %1007 = vmatprep.subr.bf16.mxu0 0
      %1008 = vmatpush2.bf16.msra.mxu0 0
      %1009 = vmatprep.subr.bf16.mxu0 0
      %1010 = vmatpush2.bf16.msra.mxu0 0
      %1011 = vmatprep.subr.bf16.mxu0 0
      %1012 = vmatpush2.bf16.msra.mxu0 0
      %1013 = vmatprep.mubr.bf16.mxu0 0
      %1014 = vmatmul.mubr.bf16.gmra.mxu0 %v979
      %v1015 = vpop.f32.mrf.mxu0
      %v1016 = vadd.f32 0.0, %v1015
      %v1017 = vpop.f32.mrf.mxu0
      %v1018 = vpop.f32.mrf.mxu0
      %v1019 = vadd.f32 0.0, %v1018
      %v1020 = vpop.f32.mrf.mxu0
      %1021 = vdwg.mxu0
      %v1022 = vpack.c.bf16 %v1019, %v1016
      %v1023 = vld [vmem:[%s711] sm:$0xf]
      %v1024 = vld [vmem:[%s711 + $0x4] sm:$0xf]
      %1025 = vrot.lane.b32.xlu0 %v892, 112
      %v1026 = vpop.permute.xlu0 %1025
      %1027 = vrot.lane.b32.xlu0 %v892, 80
      %v1028 = vpop.permute.xlu0 %1027
      %v1030 = vsel %vm900, %v1026, 0
      %v1033 = vsel %vm900, %v1028, 0
      %1035 = vmatprep.subr.bf16.mxu0 0
      %1036 = vmatpush1.bf16.xpose.msra.mxu0 0
      %1037 = vmatprep.subr.bf16.mxu0 0
      %1038 = vmatpush1.bf16.xpose.msra.mxu0 0
      %1039 = vmatprep.subr.bf16.mxu0 0
      %1040 = vmatpush1.bf16.xpose.msra.mxu0 0
      %1041 = vmatprep.subr.bf16.mxu0 0
      %1042 = vmatpush1.bf16.xpose.msra.mxu0 0
      %1043 = vmatprep.subr.bf16.mxu0 0
      %1044 = vmatpush1.bf16.xpose.msra.mxu0 0
      %1045 = vmatprep.subr.bf16.mxu0 0
      %1046 = vmatpush1.bf16.xpose.msra.mxu0 0
      %1047 = vmatprep.subr.bf16.mxu0 0
      %1048 = vmatpush1.bf16.xpose.msra.mxu0 0
      %1049 = vmatprep.subr.bf16.mxu0 0
      %1050 = vmatpush1.bf16.xpose.msra.mxu0 %v1033
      %1051 = vmatprep.subr.bf16.mxu0 0
      %1052 = vmatpush2.bf16.xpose.msra.mxu0 0
      %1053 = vmatprep.subr.bf16.mxu0 0
      %1054 = vmatpush2.bf16.xpose.msra.mxu0 0
      %1055 = vmatprep.subr.bf16.mxu0 0
      %1056 = vmatpush2.bf16.xpose.msra.mxu0 0
      %1057 = vmatprep.subr.bf16.mxu0 0
      %1058 = vmatpush2.bf16.xpose.msra.mxu0 0
      %1059 = vmatprep.subr.bf16.mxu0 0
      %1060 = vmatpush2.bf16.xpose.msra.mxu0 0
      %1061 = vmatprep.subr.bf16.mxu0 0
      %1062 = vmatpush2.bf16.xpose.msra.mxu0 0
      %1063 = vmatprep.subr.bf16.mxu0 0
      %1064 = vmatpush2.bf16.xpose.msra.mxu0 0
      %1065 = vmatprep.subr.bf16.mxu0 0
      %1066 = vmatpush2.bf16.xpose.msra.mxu0 0
      %1067 = vmatprep.mubr.bf16.mxu0 0
      %1068 = vmatmul.mubr.bf16.gmra.mxu0 %v1030
      %v1069 = vpop.f32.mrf.mxu0
      %v1070 = vadd.f32 0.0, %v1069
      %v1071 = vpop.f32.mrf.mxu0
      %v1072 = vpop.f32.mrf.mxu0
      %v1073 = vadd.f32 0.0, %v1072
      %v1074 = vpop.f32.mrf.mxu0
      %1075 = vdwg.mxu0
      %v1076 = vmul.f32 %v1070, 0.25
      %v1077 = vmul.f32 %v1073, 0.25
      %v1078 = vadd.f32 %v1076, %v895
      %v1079 = vadd.f32 %v1077, %v896
      %v1080 = vsel %vm900, %v1078, -inf
      %1081 = vmax.xlane.f32.xlu0 %v1080
      %v1082 = vpop.xlane.xlu0 %1081
      %v1083 = vsel %vm900, %v1079, -inf
      %1084 = vmax.xlane.f32.xlu0 %v1083
      %v1085 = vpop.xlane.xlu0 %1084
      %v1086 = vsub.f32 %v1078, %v1082
      %v1087 = vsub.f32 %v1079, %v1085
      %v1088 = vmul.f32 %v1086, 1.442695
      %v1089 = vpow.pop %v1088
      %v1090 = vmul.f32 %v1087, 1.442695
      %v1091 = vpow.pop %v1090
      %v1092 = vsel %vm900, %v1089, 0.0
      %1093 = vadd.xlane.f32.xlu0 %v1092
      %v1094 = vpop.xlane.xlu0 %1093
      %v1095 = vsel %vm900, %v1091, 0.0
      %1096 = vadd.xlane.f32.xlu0 %v1095
      %v1097 = vpop.xlane.xlu0 %1096
      %v1098 = vrcp.pop %v1094
      %v1099 = vrcp.pop %v1097
      %v1100 = vmul.f32 %v1089, %v1098
      %v1101 = vmul.f32 %v1091, %v1099
      %v1102 = vpack.c.bf16 %v1101, %v1100
      %1103 = vrot.lane.b32.xlu0 %v892, 48
      %v1104 = vpop.permute.xlu0 %1103
      %v1107 = vsel %vm900, %v1102, 0
      %1109 = vmatprep.subr.bf16.mxu0 0
      %1110 = vmatpush1.bf16.msra.mxu0 0
      %1111 = vmatprep.subr.bf16.mxu0 0
      %1112 = vmatpush1.bf16.msra.mxu0 0
      %1113 = vmatprep.subr.bf16.mxu0 0
      %1114 = vmatpush1.bf16.msra.mxu0 0
      %1115 = vmatprep.subr.bf16.mxu0 0
      %1116 = vmatpush1.bf16.msra.mxu0 0
      %1117 = vmatprep.subr.bf16.mxu0 0
      %1118 = vmatpush1.bf16.msra.mxu0 0
      %1119 = vmatprep.subr.bf16.mxu0 0
      %1120 = vmatpush1.bf16.msra.mxu0 0
      %1121 = vmatprep.subr.bf16.mxu0 0
      %1122 = vmatpush1.bf16.msra.mxu0 0
      %1123 = vmatprep.subr.bf16.mxu0 0
      %1124 = vmatpush1.bf16.msra.mxu0 %v1104
      %1125 = vmatprep.subr.bf16.mxu0 0
      %1126 = vmatpush2.bf16.msra.mxu0 0
      %1127 = vmatprep.subr.bf16.mxu0 0
      %1128 = vmatpush2.bf16.msra.mxu0 0
      %1129 = vmatprep.subr.bf16.mxu0 0
      %1130 = vmatpush2.bf16.msra.mxu0 0
      %1131 = vmatprep.subr.bf16.mxu0 0
      %1132 = vmatpush2.bf16.msra.mxu0 0
      %1133 = vmatprep.subr.bf16.mxu0 0
      %1134 = vmatpush2.bf16.msra.mxu0 0
      %1135 = vmatprep.subr.bf16.mxu0 0
      %1136 = vmatpush2.bf16.msra.mxu0 0
      %1137 = vmatprep.subr.bf16.mxu0 0
      %1138 = vmatpush2.bf16.msra.mxu0 0
      %1139 = vmatprep.subr.bf16.mxu0 0
      %1140 = vmatpush2.bf16.msra.mxu0 0
      %1141 = vmatprep.mubr.bf16.mxu0 0
      %1142 = vmatmul.mubr.bf16.gmra.mxu0 %v1107
      %v1143 = vpop.f32.mrf.mxu0
      %v1144 = vadd.f32 0.0, %v1143
      %v1145 = vpop.f32.mrf.mxu0
      %v1146 = vpop.f32.mrf.mxu0
      %v1147 = vadd.f32 0.0, %v1146
      %v1148 = vpop.f32.mrf.mxu0
      %1149 = vdwg.mxu0
      %v1150 = vpack.c.bf16 %v1147, %v1144
      %v1151 = vld [vmem:[%s711 + $0x8] sm:$0xf]
      %v1152 = vld [vmem:[%s711 + $0xc] sm:$0xf]
      %v1155 = vunpack.c.l.b16 %v1151
      %v1156 = vunpack.c.l.b16 %v1152
      %v1157 = vpack.c.b16 %v1156, %v1155
      %v1160 = vsel %vm900, %v1150, 0
      %1162 = vmatprep.subr.bf16.mxu0 0
      %1163 = vmatpush1.bf16.msra.mxu0 0
      %1164 = vmatprep.subr.bf16.mxu0 0
      %1165 = vmatpush1.bf16.msra.mxu0 0
      %1166 = vmatprep.subr.bf16.mxu0 0
      %1167 = vmatpush1.bf16.msra.mxu0 0
      %1168 = vmatprep.subr.bf16.mxu0 0
      %1169 = vmatpush1.bf16.msra.mxu0 0
      %1170 = vmatprep.subr.bf16.mxu0 0
      %1171 = vmatpush1.bf16.msra.mxu0 0
      %1172 = vmatprep.subr.bf16.mxu0 0
      %1173 = vmatpush1.bf16.msra.mxu0 0
      %1174 = vmatprep.subr.bf16.mxu0 0
      %1175 = vmatpush1.bf16.msra.mxu0 0
      %1176 = vmatprep.subr.bf16.mxu0 0
      %1177 = vmatpush1.bf16.msra.mxu0 %v1157
      %1178 = vmatprep.subr.bf16.mxu0 0
      %1179 = vmatpush2.bf16.msra.mxu0 0
      %1180 = vmatprep.subr.bf16.mxu0 0
      %1181 = vmatpush2.bf16.msra.mxu0 0
      %1182 = vmatprep.subr.bf16.mxu0 0
      %1183 = vmatpush2.bf16.msra.mxu0 0
      %1184 = vmatprep.subr.bf16.mxu0 0
      %1185 = vmatpush2.bf16.msra.mxu0 0
      %1186 = vmatprep.subr.bf16.mxu0 0
      %1187 = vmatpush2.bf16.msra.mxu0 0
      %1188 = vmatprep.subr.bf16.mxu0 0
      %1189 = vmatpush2.bf16.msra.mxu0 0
      %1190 = vmatprep.subr.bf16.mxu0 0
      %1191 = vmatpush2.bf16.msra.mxu0 0
      %1192 = vmatprep.subr.bf16.mxu0 0
      %1193 = vmatpush2.bf16.msra.mxu0 0
      %1194 = vmatprep.mubr.bf16.mxu0 0
      %1195 = vmatmul.mubr.bf16.gmra.mxu0 %v1160
      %v1196 = vpop.f32.mrf.mxu0
      %v1197 = vadd.f32 0.0, %v1196
      %v1198 = vpop.f32.mrf.mxu0
      %v1199 = vpop.f32.mrf.mxu0
      %v1200 = vadd.f32 0.0, %v1199
      %v1201 = vpop.f32.mrf.mxu0
      %1202 = vdwg.mxu0
      %v1205 = vunpack.c.l.b16 %v1023
      %v1206 = vunpack.c.l.b16 %v1024
      %v1207 = vpack.c.b16 %v1206, %v1205
      %v1210 = vsel %vm900, %v1022, 0
      %1212 = vmatprep.subr.bf16.mxu0 0
      %1213 = vmatpush1.bf16.msra.mxu0 0
      %1214 = vmatprep.subr.bf16.mxu0 0
      %1215 = vmatpush1.bf16.msra.mxu0 0
      %1216 = vmatprep.subr.bf16.mxu0 0
      %1217 = vmatpush1.bf16.msra.mxu0 0
      %1218 = vmatprep.subr.bf16.mxu0 0
      %1219 = vmatpush1.bf16.msra.mxu0 0
      %1220 = vmatprep.subr.bf16.mxu0 0
      %1221 = vmatpush1.bf16.msra.mxu0 0
      %1222 = vmatprep.subr.bf16.mxu0 0
      %1223 = vmatpush1.bf16.msra.mxu0 0
      %1224 = vmatprep.subr.bf16.mxu0 0
      %1225 = vmatpush1.bf16.msra.mxu0 0
      %1226 = vmatprep.subr.bf16.mxu0 0
      %1227 = vmatpush1.bf16.msra.mxu0 %v1207
      %1228 = vmatprep.subr.bf16.mxu0 0
      %1229 = vmatpush2.bf16.msra.mxu0 0
      %1230 = vmatprep.subr.bf16.mxu0 0
      %1231 = vmatpush2.bf16.msra.mxu0 0
      %1232 = vmatprep.subr.bf16.mxu0 0
      %1233 = vmatpush2.bf16.msra.mxu0 0
      %1234 = vmatprep.subr.bf16.mxu0 0
      %1235 = vmatpush2.bf16.msra.mxu0 0
      %1236 = vmatprep.subr.bf16.mxu0 0
      %1237 = vmatpush2.bf16.msra.mxu0 0
      %1238 = vmatprep.subr.bf16.mxu0 0
      %1239 = vmatpush2.bf16.msra.mxu0 0
      %1240 = vmatprep.subr.bf16.mxu0 0
      %1241 = vmatpush2.bf16.msra.mxu0 0
      %1242 = vmatprep.subr.bf16.mxu0 0
      %1243 = vmatpush2.bf16.msra.mxu0 0
      %1244 = vmatprep.mubr.bf16.mxu0 0
      %1245 = vmatmul.mubr.bf16.gmra.mxu0 %v1210
      %v1246 = vpop.f32.mrf.mxu0
      %v1247 = vadd.f32 %v1197, %v1246
      %v1248 = vpop.f32.mrf.mxu0
      %v1249 = vpop.f32.mrf.mxu0
      %v1250 = vadd.f32 %v1200, %v1249
      %v1251 = vpop.f32.mrf.mxu0
      %1252 = vdwg.mxu0
      %v1253 = vld [vmem:[%s714] sm:$0x1]
      %v1255 = vlaneseq
      %v1256 = vshrl.u32 %v1255, 7
      %v1257 = vsub.s32 0, %v1256
      %v1258 = vrot.slane %v1253, %v1257
      %v1260 = vadd.f32 %v1247, %v1258
      %v1261 = vadd.f32 %v1250, %v1258
      %v1262 = vadd.f32 %v817, %v1260
      %v1263 = vadd.f32 %v818, %v1261
      %v1264 = vld [vmem:[%s717] sm:$0x1]
      %v1265 = vld [vmem:[%s720] sm:$0x1]
      %v1266 = vsel %vm847, %v1262, 0.0
      %1267 = vadd.xlane.f32.xlu0 %v1266
      %v1268 = vpop.xlane.xlu0 %1267
      %v1269 = vsel %vm847, %v1263, 0.0
      %1270 = vadd.xlane.f32.xlu0 %v1269
      %v1271 = vpop.xlane.xlu0 %1270
      %v1272 = vrcp.pop 32.0
      %v1273 = vmul.f32 %v1268, %v1272
      %v1274 = vmul.f32 %v1271, %v1272
      %v1275 = vsub.f32 %v1262, %v1273
      %v1276 = vsub.f32 %v1263, %v1274
      %v1277 = vmul.f32 %v1275, %v1275
      %v1278 = vmul.f32 %v1276, %v1276
      %v1279 = vsel %vm847, %v1277, 0.0
      %1280 = vadd.xlane.f32.xlu0 %v1279
      %v1281 = vpop.xlane.xlu0 %1280
      %v1282 = vsel %vm847, %v1278, 0.0
      %1283 = vadd.xlane.f32.xlu0 %v1282
      %v1284 = vpop.xlane.xlu0 %1283
      %v1285 = vmul.f32 %v1281, %v1272
      %v1286 = vmul.f32 %v1284, %v1272
      %v1287 = vadd.f32 %v1285, 1e-12
      %v1288 = vadd.f32 %v1286, 1e-12
      %v1289 = vrsqrt.pop %v1287
      %v1290 = vrsqrt.pop %v1288
      %v1291 = vmul.f32 %v1275, %v1289
      %v1292 = vmul.f32 %v1276, %v1290
      %v1294 = vlaneseq
      %v1295 = vshrl.u32 %v1294, 7
      %v1296 = vsub.s32 0, %v1295
      %v1297 = vrot.slane %v1264, %v1296
      %v1299 = vmul.f32 %v1291, %v1297
      %v1300 = vmul.f32 %v1292, %v1297
      %v1302 = vlaneseq
      %v1303 = vshrl.u32 %v1302, 7
      %v1304 = vsub.s32 0, %v1303
      %v1305 = vrot.slane %v1265, %v1304
      %v1307 = vadd.f32 %v1299, %v1305
      %v1308 = vadd.f32 %v1300, %v1305
      %v1309 = vpack.c.bf16 %v1308, %v1307
      %v1310 = vld [vmem:[%s725] sm:$0xf]
      %v1311 = vld [vmem:[%s725 + $0x4] sm:$0xf]
      %v1312 = vld [vmem:[%s725 + $0x8] sm:$0xf]
      %v1313 = vld [vmem:[%s725 + $0xc] sm:$0xf]
      %v1314 = vld [vmem:[%s728] sm:$0x1]
      %v1316 = vlaneseq
      %v1317 = vshrl.u32 %v1316, 7
      %v1318 = vsub.s32 0, %v1317
      %v1319 = vrot.slane %v1314, %v1318
      %v1325 = vunpack.c.l.b16 %v1310
      %v1326 = vunpack.c.l.b16 %v1311
      %v1327 = vunpack.c.l.b16 %v1312
      %v1328 = vunpack.c.l.b16 %v1313
      %v1329 = vpack.c.b16 %v1326, %v1325
      %v1330 = vpack.c.b16 %v1328, %v1327
      %v1334 = vsel %vm847, %v1309, 0
      %1336 = vmatprep.subr.bf16.mxu0 0
      %1337 = vmatpush1.bf16.msra.mxu0 0
      %1338 = vmatprep.subr.bf16.mxu0 0
      %1339 = vmatpush1.bf16.msra.mxu0 0
      %1340 = vmatprep.subr.bf16.mxu0 0
      %1341 = vmatpush1.bf16.msra.mxu0 0
      %1342 = vmatprep.subr.bf16.mxu0 0
      %1343 = vmatpush1.bf16.msra.mxu0 0
      %1344 = vmatprep.subr.bf16.mxu0 0
      %1345 = vmatpush1.bf16.msra.mxu0 0
      %1346 = vmatprep.subr.bf16.mxu0 0
      %1347 = vmatpush1.bf16.msra.mxu0 0
      %1348 = vmatprep.subr.bf16.mxu0 0
      %1349 = vmatpush1.bf16.msra.mxu0 %v1330
      %1350 = vmatprep.subr.bf16.mxu0 0
      %1351 = vmatpush1.bf16.msra.mxu0 %v1329
      %1352 = vmatprep.subr.bf16.mxu0 0
      %1353 = vmatpush2.bf16.msra.mxu0 0
      %1354 = vmatprep.subr.bf16.mxu0 0
      %1355 = vmatpush2.bf16.msra.mxu0 0
      %1356 = vmatprep.subr.bf16.mxu0 0
      %1357 = vmatpush2.bf16.msra.mxu0 0
      %1358 = vmatprep.subr.bf16.mxu0 0
      %1359 = vmatpush2.bf16.msra.mxu0 0
      %1360 = vmatprep.subr.bf16.mxu0 0
      %1361 = vmatpush2.bf16.msra.mxu0 0
      %1362 = vmatprep.subr.bf16.mxu0 0
      %1363 = vmatpush2.bf16.msra.mxu0 0
      %1364 = vmatprep.subr.bf16.mxu0 0
      %1365 = vmatpush2.bf16.msra.mxu0 0
      %1366 = vmatprep.subr.bf16.mxu0 0
      %1367 = vmatpush2.bf16.msra.mxu0 0
      %1368 = vmatprep.mubr.bf16.mxu0 0
      %1369 = vmatmul.mubr.bf16.gmra.mxu0 %v1334
      %v1370 = vpop.f32.mrf.mxu0
      %v1371 = vadd.f32 %v1319, %v1370
      %v1372 = vpop.f32.mrf.mxu0
      %v1373 = vpop.f32.mrf.mxu0
      %v1374 = vadd.f32 %v1319, %v1373
      %v1375 = vpop.f32.mrf.mxu0
      %1376 = vdwg.mxu0
      %v1377 = vmul.f32 %v1371, 0.5
      %v1378 = vmul.f32 %v1374, 0.5
      %v1379 = vmul.f32 %v1371, 0.044715
      %v1380 = vmul.f32 %v1374, 0.044715
      %v1381 = vmul.f32 %v1379, %v1371
      %v1382 = vmul.f32 %v1380, %v1374
      %v1383 = vmul.f32 %v1381, %v1371
      %v1384 = vmul.f32 %v1382, %v1374
      %v1385 = vadd.f32 %v1371, %v1383
      %v1386 = vadd.f32 %v1374, %v1384
      %v1387 = vmul.f32 %v1385, 0.7978846
      %v1388 = vmul.f32 %v1386, 0.7978846
      %v1389 = vtanh.pop %v1387
      %v1390 = vtanh.pop %v1388
      %v1391 = vadd.f32 %v1389, 1.0
      %v1392 = vadd.f32 %v1390, 1.0
      %v1393 = vmul.f32 %v1377, %v1391
      %v1394 = vmul.f32 %v1378, %v1392
      %v1395 = vpack.c.bf16 %v1394, %v1393
      %v1396 = vld [vmem:[%s733] sm:$0xf]
      %v1397 = vld [vmem:[%s733 + $0x4] sm:$0xf]
      %v1398 = vld [vmem:[%s733 + $0x8] sm:$0xf]
      %v1399 = vld [vmem:[%s733 + $0xc] sm:$0xf]
      %v1400 = vld [vmem:[%s733 + $0x10] sm:$0xf]
      %v1401 = vld [vmem:[%s733 + $0x14] sm:$0xf]
      %v1402 = vld [vmem:[%s733 + $0x18] sm:$0xf]
      %v1403 = vld [vmem:[%s733 + $0x1c] sm:$0xf]
      %v1404 = vld [vmem:[%s736] sm:$0x1]
      %v1406 = vlaneseq
      %v1407 = vshrl.u32 %v1406, 7
      %v1408 = vsub.s32 0, %v1407
      %v1409 = vrot.slane %v1404, %v1408
      %v1419 = vunpack.c.l.b16 %v1396
      %v1420 = vunpack.c.l.b16 %v1397
      %v1421 = vunpack.c.l.b16 %v1398
      %v1422 = vunpack.c.l.b16 %v1399
      %v1423 = vunpack.c.l.b16 %v1400
      %v1424 = vunpack.c.l.b16 %v1401
      %v1425 = vunpack.c.l.b16 %v1402
      %v1426 = vunpack.c.l.b16 %v1403
      %v1427 = vpack.c.b16 %v1420, %v1419
      %v1428 = vpack.c.b16 %v1422, %v1421
      %v1429 = vpack.c.b16 %v1424, %v1423
      %v1430 = vpack.c.b16 %v1426, %v1425
      %vm1435 = vcmask 523264
      %v1437 = vsel %vm1435, %v1395, 0
      %1439 = vmatprep.subr.bf16.mxu0 0
      %1440 = vmatpush1.bf16.msra.mxu0 0
      %1441 = vmatprep.subr.bf16.mxu0 0
      %1442 = vmatpush1.bf16.msra.mxu0 0
      %1443 = vmatprep.subr.bf16.mxu0 0
      %1444 = vmatpush1.bf16.msra.mxu0 0
      %1445 = vmatprep.subr.bf16.mxu0 0
      %1446 = vmatpush1.bf16.msra.mxu0 0
      %1447 = vmatprep.subr.bf16.mxu0 0
      %1448 = vmatpush1.bf16.msra.mxu0 %v1430
      %1449 = vmatprep.subr.bf16.mxu0 0
      %1450 = vmatpush1.bf16.msra.mxu0 %v1429
      %1451 = vmatprep.subr.bf16.mxu0 0
      %1452 = vmatpush1.bf16.msra.mxu0 %v1428
      %1453 = vmatprep.subr.bf16.mxu0 0
      %1454 = vmatpush1.bf16.msra.mxu0 %v1427
      %1455 = vmatprep.subr.bf16.mxu0 0
      %1456 = vmatpush2.bf16.msra.mxu0 0
      %1457 = vmatprep.subr.bf16.mxu0 0
      %1458 = vmatpush2.bf16.msra.mxu0 0
      %1459 = vmatprep.subr.bf16.mxu0 0
      %1460 = vmatpush2.bf16.msra.mxu0 0
      %1461 = vmatprep.subr.bf16.mxu0 0
      %1462 = vmatpush2.bf16.msra.mxu0 0
      %1463 = vmatprep.subr.bf16.mxu0 0
      %1464 = vmatpush2.bf16.msra.mxu0 0
      %1465 = vmatprep.subr.bf16.mxu0 0
      %1466 = vmatpush2.bf16.msra.mxu0 0
      %1467 = vmatprep.subr.bf16.mxu0 0
      %1468 = vmatpush2.bf16.msra.mxu0 0
      %1469 = vmatprep.subr.bf16.mxu0 0
      %1470 = vmatpush2.bf16.msra.mxu0 0
      %1471 = vmatprep.mubr.bf16.mxu0 0
      %1472 = vmatmul.mubr.bf16.gmra.mxu0 %v1437
      %v1473 = vpop.f32.mrf.mxu0
      %v1474 = vadd.f32 %v1409, %v1473
      %v1475 = vpop.f32.mrf.mxu0
      %v1476 = vpop.f32.mrf.mxu0
      %v1477 = vadd.f32 %v1409, %v1476
      %v1478 = vpop.f32.mrf.mxu0
      %1479 = vdwg.mxu0
      %v1480 = vadd.f32 %v1307, %v1474
      %v1481 = vadd.f32 %v1308, %v1477
      %v1482 = vld [vmem:[%s739] sm:$0x1]
      %v1483 = vld [vmem:[%s742] sm:$0x1]
      %v1484 = vsel %vm847, %v1480, 0.0
      %1485 = vadd.xlane.f32.xlu0 %v1484
      %v1486 = vpop.xlane.xlu0 %1485
      %v1487 = vsel %vm847, %v1481, 0.0
      %1488 = vadd.xlane.f32.xlu0 %v1487
      %v1489 = vpop.xlane.xlu0 %1488
      %v1490 = vmul.f32 %v1486, %v1272
      %v1491 = vmul.f32 %v1489, %v1272
      %v1492 = vsub.f32 %v1480, %v1490
      %v1493 = vsub.f32 %v1481, %v1491
      %v1494 = vmul.f32 %v1492, %v1492
      %v1495 = vmul.f32 %v1493, %v1493
      %v1496 = vsel %vm847, %v1494, 0.0
      %1497 = vadd.xlane.f32.xlu0 %v1496
      %v1498 = vpop.xlane.xlu0 %1497
      %v1499 = vsel %vm847, %v1495, 0.0
      %1500 = vadd.xlane.f32.xlu0 %v1499
      %v1501 = vpop.xlane.xlu0 %1500
      %v1502 = vmul.f32 %v1498, %v1272
      %v1503 = vmul.f32 %v1501, %v1272
      %v1504 = vadd.f32 %v1502, 1e-12
      %v1505 = vadd.f32 %v1503, 1e-12
      %v1506 = vrsqrt.pop %v1504
      %v1507 = vrsqrt.pop %v1505
      %v1508 = vmul.f32 %v1492, %v1506
      %v1509 = vmul.f32 %v1493, %v1507
      %v1511 = vlaneseq
      %v1512 = vshrl.u32 %v1511, 7
      %v1513 = vsub.s32 0, %v1512
      %v1514 = vrot.slane %v1482, %v1513
      %v1516 = vmul.f32 %v1508, %v1514
      %v1517 = vmul.f32 %v1509, %v1514
      %v1519 = vlaneseq
      %v1520 = vshrl.u32 %v1519, 7
      %v1521 = vsub.s32 0, %v1520
      %v1522 = vrot.slane %v1483, %v1521
      %v1524 = vadd.f32 %v1516, %v1522
      %v1525 = vadd.f32 %v1517, %v1522
      %v1526 = vpack.c.bf16 %v1525, %v1524
      %v1528 = vunpack.c.l.b16 %v1526
      %v1529 = vunpack.c.h.b16 %v1526
      %v1530 = vpack.c.b16 %v1528, %v1528
      %v1531 = vpack.c.b16 %v1529, %v1529
      %vm1534 = vcmask 257024
      %1535 = vst.msk [vmem:[%s747] sm:$0xf] %vm1534, %v1530
      %1536 = vst.msk [vmem:[%s747 + $0x4] sm:$0xf] %vm1534, %v1531
      %s1537 = smul.u32 2, %s31
      %p1538 = scmp.lt.s32.totalorder %s1537, 3
      %s1539 = scalar_select %p1538, %s1537, 3
      %s1540 = smul.addr %s1539, 4
      %s1541 = scalar_lea.vmem %s16, %s1540
      // Predicated region
      $region89: #{span_marker_forward.2} parent=83 // pred_check
        %p1542 = pneg %p463
      $region90: #{span_marker_forward.2} parent=83 // pred_check_branch
        %1544 = sbr.rel (%p1542) target = $region92
      $region91: #{span_marker_forward.2} parent=83 // pred_region
        %s1545 = smul.u32 2, %s31
      $region92: #{span_marker_forward.2} parent=83 // pred_fallthru
        _
    $region84: #{span_marker_forward.2} parent=5 // pred_fallthru
      _
    %p1546 = scmp.le.s32.totalorder 2, %s22
    // Predicated region
    $region93: #{span_marker_forward.2} parent=5 // pred_check
      %p1547 = pneg %p1546
    $region94: #{span_marker_forward.2} parent=5 // pred_check_branch
      %1549 = sbr.rel (%p1547) target = $region96
    $region95: #{span_marker_forward.2} parent=5 // pred_region
      %s1550 = ssub.s32 %s22, 2
      // Predicated region
      $region97: #{span_marker_forward.2} parent=95 // pred_check
        %p1551 = pneg %p469
      $region98: #{span_marker_forward.2} parent=95 // pred_check_branch
        %1553 = sbr.rel (%p1551) target = $region100
      $region99: #{span_marker_forward.2} parent=95 // pred_region
        %s1554 = smul.u32 2, %s33
        %p1555 = scmp.lt.s32.totalorder %s1554, 3
        %s1556 = scalar_select %p1555, %s1554, 3
        %s1557 = smul.addr %s1556, 4
        %s1558 = scalar_lea.vmem %s16, %s1557
      $region100: #{span_marker_forward.2} parent=95 // pred_fallthru
        _
    $region96: #{span_marker_forward.2} parent=5 // pred_fallthru
      _
  $region6: #{span_marker_forward.2} parent=0 // loop_footer
    %s26 = sadd.s32 1, %s22
  $region7: #{span_marker_forward.2} parent=0 // loop_footer_branch
    %21 = sbr.rel target = $region3
  $region8: #{span_marker_forward.2} parent=0 // loop_exit
    _

</llo_original>
